<compile_context>
chip_gen: v5e
topology: v5e:2x2
jax: 0.10.0
libtpu: 0.0.40
codegen_flags: <defaults>
</compile_context>

<pallas_src>
import functools
import math

import jax
import jax.numpy as jnp
from jax import lax
from jax.experimental import pallas as pl
from jax.experimental.pallas import tpu as pltpu


# ----------------------------------------------------------------------------
# Plain-JAX ResNet-50 backbone, NHWC layout (glue / parameter setup)
# ----------------------------------------------------------------------------

LAYER_CFG = [(64, 3, 1), (128, 4, 2), (256, 6, 2), (512, 3, 2)]  # (planes, blocks, stride)


def _conv2d(x, w, stride=1, padding=0):
    # x: (N, H, W, Cin), w: (kh, kw, Cin, Cout)
    return lax.conv_general_dilated(
        x, w, window_strides=(stride, stride),
        padding=[(padding, padding), (padding, padding)],
        dimension_numbers=("NHWC", "HWIO", "NHWC"))


def _bn(x, p, eps=1e-5):
    gamma, beta, mean, var = p
    scale = gamma / jnp.sqrt(var + eps)
    shift = beta - mean * scale
    return x * scale + shift  # channel-last broadcast


def _maxpool_3x3_s2(x):
    return lax.reduce_window(
        x, jnp.float32(-jnp.inf), lax.max,
        window_dimensions=(1, 3, 3, 1), window_strides=(1, 2, 2, 1),
        padding=((0, 0), (1, 1), (1, 1), (0, 0)))


def _conv_init(key, out_c, in_c, kh, kw):
    n = kh * kw * out_c  # matches the PyTorch spec's He init
    return jax.random.normal(key, (kh, kw, in_c, out_c), jnp.float32) * math.sqrt(2.0 / n)


def _bn_init(c):
    return (jnp.ones((c,), jnp.float32), jnp.zeros((c,), jnp.float32),
            jnp.zeros((c,), jnp.float32), jnp.ones((c,), jnp.float32))


def make_params(key, num_classes):
    cnt = [0]

    def nk():
        cnt[0] += 1
        return jax.random.fold_in(key, cnt[0])

    params = {
        "conv1": _conv_init(nk(), 64, 3, 7, 7),
        "bn1": _bn_init(64),
    }
    layers = []
    inplanes = 64
    for planes, blocks, stride in LAYER_CFG:
        layer = []
        for bidx in range(blocks):
            s = stride if bidx == 0 else 1
            blk = {
                "conv1": _conv_init(nk(), planes, inplanes, 1, 1),
                "bn1": _bn_init(planes),
                "conv2": _conv_init(nk(), planes, planes, 3, 3),
                "bn2": _bn_init(planes),
                "conv3": _conv_init(nk(), planes * 4, planes, 1, 1),
                "bn3": _bn_init(planes * 4),
            }
            if bidx == 0 and (s != 1 or inplanes != planes * 4):
                blk["down_conv"] = _conv_init(nk(), planes * 4, inplanes, 1, 1)
                blk["down_bn"] = _bn_init(planes * 4)
            layer.append(blk)
            inplanes = planes * 4
        layers.append(layer)
    params["layers"] = layers

    # Bias-free classifier, nn.init.normal_(std=0.01).  Keep the PyTorch layout
    # (num_classes, 2048) plus the kernel-ready layout: pre-transposed, zero-padded
    # to a multiple of 128 lanes, and cast to bf16 ONCE at init (no per-forward
    # transpose / cast inside jit).
    w_cls = jax.random.normal(nk(), (num_classes, 2048), jnp.float32) * 0.01
    params["w_cls"] = w_cls
    ncp = max(128, ((num_classes + 127) // 128) * 128)
    params["w_cls_t_pad"] = (
        jnp.zeros((2048, ncp), jnp.float32).at[:, :num_classes].set(w_cls.T)
    ).astype(jnp.bfloat16)
    return params


def _bottleneck(x, blk, stride):
    out = jax.nn.relu(_bn(_conv2d(x, blk["conv1"]), blk["bn1"]))
    out = jax.nn.relu(_bn(_conv2d(out, blk["conv2"], stride=stride, padding=1), blk["bn2"]))
    out = _bn(_conv2d(out, blk["conv3"]), blk["bn3"])
    if "down_conv" in blk:
        residual = _bn(_conv2d(x, blk["down_conv"], stride=stride), blk["down_bn"])
    else:
        residual = x
    return jax.nn.relu(out + residual)


def backbone_forward(params, x):
    # x: (b*t, H, W, 3) NHWC
    x = _conv2d(x, params["conv1"], stride=2, padding=3)
    x = jax.nn.relu(_bn(x, params["bn1"]))
    x = _maxpool_3x3_s2(x)
    for (planes, blocks, stride), layer in zip(LAYER_CFG, params["layers"]):
        for bidx, blk in enumerate(layer):
            s = stride if bidx == 0 else 1
            x = _bottleneck(x, blk, s)
    return x  # (b*t, h, w, 2048) channel-last


# ----------------------------------------------------------------------------
# Pallas kernel: fused TempoAvgPooling head
#   feature[b, c] = mean over (t, h, w) of featmaps            (f32 accumulation)
#   logits        = feature @ W_cls^T  (bias-free, bf16 MXU path, f32 accum)
# Layout: fm is (b, t*h*w, C) bf16 with C=2048 on the lane axis; classifier
# weight is (C, ncp) bf16 with ncp a multiple of 128 (lane-dense logits store).
# Grid over batch blocks of bm rows, megacore-parallel.
# ----------------------------------------------------------------------------

def _head_kernel(fm_ref, wc_ref, feat_ref, logits_ref, *, inv_thw):
    # Upcast immediately after load (v5e VPU has no bf16 ALU); accumulate in f32.
    fm = fm_ref[...].astype(jnp.float32)                  # (bm, t*hw, C)
    feat = jnp.sum(fm, axis=1) * inv_thw                  # (bm, C)  joint (t,h,w) mean
    feat_ref[...] = feat
    logits_ref[...] = jnp.dot(feat.astype(jnp.bfloat16), wc_ref[...],
                              preferred_element_type=jnp.float32)   # (bm, ncp) on MXU


# Conservative across generations: v7x has 64 MiB physical VMEM per TC.
_VMEM_BUDGET_BYTES = 40 * 1024 * 1024


def tempo_head_pallas(featmaps_nhwc, w_cls_t_pad, num_classes, b, t):
    bt, H, W, C = featmaps_nhwc.shape
    assert bt == b * t
    thw = t * H * W
    ncp = w_cls_t_pad.shape[1]

    # (b*t, h, w, C) -> (b, t*h*w, C): pure reshape (no data movement) thanks to
    # the NHWC backbone.  bf16 cast fuses into the backbone's final elementwise
    # fusion, halving the dominant HBM read of this (HBM-bound) head.
    fm = featmaps_nhwc.astype(jnp.bfloat16).reshape(b, thw, C)

    # --- generation-aware batch-block sizing (explicit VMEM budget) ----------
    fm_row_bytes = thw * C * 2 * 2           # bf16 fm block, double-buffered
    out_row_bytes = (C + ncp) * 4 * 2        # f32 outputs, double-buffered
    weight_bytes = C * ncp * 2               # bf16 weight, single-buffered
    avail = max(_VMEM_BUDGET_BYTES - weight_bytes, fm_row_bytes + out_row_bytes)
    budget_bm = max(1, avail // (fm_row_bytes + out_row_bytes))
    bm = int(min(budget_bm, 16, b))
    if bm < b:
        # Keep (bm, C)/(bm, ncp) output blocks sublane-aligned when not covering
        # the whole (padded) batch in one step.
        bm = max(8, (bm // 8) * 8)
    nb = pl.cdiv(b, bm)
    b_pad = nb * bm
    if b_pad != b:
        fm = jnp.pad(fm, ((0, b_pad - b), (0, 0), (0, 0)))  # zero rows: sliced off below

    # Explicit scoped-VMEM limit derived from actual block sizes (v5e default is
    # only 16 MiB; v7x total is 64 MiB — stay well under).
    need = bm * fm_row_bytes + bm * out_row_bytes + weight_bytes
    vmem_limit = int(min(max(need + (4 << 20), 16 << 20), 60 << 20))
    # NOTE: if t*hw ever grows so large that even bm=8 blows the budget, add a
    # trailing "arbitrary" reduction axis over t*hw chunks with an f32 accumulator.

    kernel = functools.partial(_head_kernel, inv_thw=float(1.0 / thw))

    feat, logits_pad = pl.pallas_call(
        kernel,
        out_shape=(jax.ShapeDtypeStruct((b_pad, C), jnp.float32),
                   jax.ShapeDtypeStruct((b_pad, ncp), jnp.float32)),
        grid_spec=pltpu.PrefetchScalarGridSpec(
            num_scalar_prefetch=0,
            grid=(nb,),
            in_specs=[
                pl.BlockSpec((bm, thw, C), lambda i: (i, 0, 0)),
                # Grid-invariant classifier weight: single buffer (no 2nd copy).
                pl.BlockSpec((C, ncp), lambda i: (0, 0),
                             pipeline_mode=pl.Buffered(1)),
            ],
            out_specs=[
                pl.BlockSpec((bm, C), lambda i: (i, 0)),
                pl.BlockSpec((bm, ncp), lambda i: (i, 0)),
            ],
        ),
        compiler_params=pltpu.CompilerParams(
            dimension_semantics=("parallel",),
            vmem_limit_bytes=vmem_limit),
    )(fm, w_cls_t_pad)

    feature = feat[:b]                              # (b, 2048) f32
    logits = logits_pad[:b, :num_classes]           # padded class cols sliced off
    return logits, feature


# ----------------------------------------------------------------------------
# Full forward (training path of TempoAvgPooling: returns (logits, feature))
# ----------------------------------------------------------------------------

def tempo_avg_pooling_forward(params, x, num_classes, training=True):
    # x: (b, t, 3, H, W)   (PyTorch layout)
    b, t = x.shape[0], x.shape[1]
    x = x.reshape(b * t, x.shape[2], x.shape[3], x.shape[4])
    x = jnp.transpose(x, (0, 2, 3, 1))             # NCHW -> NHWC (3-channel input, cheap)
    featmaps = backbone_forward(params, x)         # (b*t, h, w, 2048) channel-last
    logits, feature = tempo_head_pallas(
        featmaps, params["w_cls_t_pad"], num_classes, b, t)
    if not training:
        return feature
    return logits, feature


if __name__ == "__main__":
    key = jax.random.PRNGKey(0)
    num_classes = 16
    b, t = 2, 4
    # Global average pooling makes the head size-agnostic; 64x64 keeps the
    # plain-JAX backbone cheap for the smoke test (feature maps end up 2x2).
    x = jax.random.normal(jax.random.fold_in(key, 9999), (b, t, 3, 64, 64), jnp.float32)
    params = make_params(key, num_classes)

    fwd = jax.jit(lambda p, xx: tempo_avg_pooling_forward(p, xx, num_classes))
    logits, feature = fwd(params, x)
    jax.block_until_ready((logits, feature))

    assert logits.shape == (b, num_classes), logits.shape
    assert feature.shape == (b, 2048), feature.shape
    assert bool(jnp.all(jnp.isfinite(logits))) and bool(jnp.all(jnp.isfinite(feature)))
    print("KERNEL_OK")
</pallas_src>

<mosaic_0001>
module attributes {stable_mosaic.version = 11 : i64} {
  func.func @_head_kernel(%arg0: i32, %arg1: memref<2x16x2048xbf16, #tpu.memory_space<vmem>>, %arg2: memref<2048x128xbf16, #tpu.memory_space<vmem>>, %arg3: memref<2x2048xf32, #tpu.memory_space<vmem>>, %arg4: memref<2x128xf32, #tpu.memory_space<vmem>>) attributes {dimension_semantics = [#tpu.dimension_semantics<parallel>], iteration_bounds = array<i64: 1>, scalar_prefetch = 0 : i64, scratch_operands = 0 : i64, tpu.core_type = #tpu.core_type<tc>, window_params = [{transform_indices = @transform_0, window_bounds = array<i64: 2, 16, 2048>}, {pipeline_mode = #tpu.pipeline_mode<synchronous>, transform_indices = @transform_1, window_bounds = array<i64: 2048, 128>}, {transform_indices = @transform_2, window_bounds = array<i64: 2, 2048>}, {transform_indices = @transform_3, window_bounds = array<i64: 2, 128>}]} {
    %c0 = arith.constant 0 : index
    %c0_0 = arith.constant 0 : index
    %c0_1 = arith.constant 0 : index
    %0 = vector.load %arg1[%c0, %c0_0, %c0_1] : memref<2x16x2048xbf16, #tpu.memory_space<vmem>>, vector<2x16x2048xbf16>
    %1 = arith.extf %0 : vector<2x16x2048xbf16> to vector<2x16x2048xf32>
    %cst = arith.constant dense<0.000000e+00> : vector<2x2048xf32>
    %2 = vector.multi_reduction <add>, %1, %cst [1] : vector<2x16x2048xf32> to vector<2x2048xf32>
    %cst_2 = arith.constant 6.250000e-02 : f32
    %3 = vector.broadcast %cst_2 : f32 to vector<2x2048xf32>
    %4 = arith.mulf %2, %3 : vector<2x2048xf32>
    %c0_3 = arith.constant 0 : index
    %c0_4 = arith.constant 0 : index
    %5 = vector.load %arg3[%c0_3, %c0_4] : memref<2x2048xf32, #tpu.memory_space<vmem>>, vector<2x2048xf32>
    tpu.vector_store %arg3[%c0_3, %c0_4], %4 {strides = array<i32>} : memref<2x2048xf32, #tpu.memory_space<vmem>>, vector<2x2048xf32>,
    %6 = arith.truncf %4 : vector<2x2048xf32> to vector<2x2048xbf16>
    %c0_5 = arith.constant 0 : index
    %c0_6 = arith.constant 0 : index
    %7 = vector.load %arg2[%c0_5, %c0_6] : memref<2048x128xbf16, #tpu.memory_space<vmem>>, vector<2048x128xbf16>
    %cst_7 = arith.constant dense<0.000000e+00> : vector<2x128xf32>
    %8 = tpu.matmul %6, %7, %cst_7 {dimension_numbers = #tpu.dot_dimension_numbers<[1], [0], [0], [1], [0, 0, 1, 1], [], []>} : vector<2x2048xbf16>, vector<2048x128xbf16>, vector<2x128xf32> -> vector<2x128xf32>
    %c0_8 = arith.constant 0 : index
    %c0_9 = arith.constant 0 : index
    %9 = vector.load %arg4[%c0_8, %c0_9] : memref<2x128xf32, #tpu.memory_space<vmem>>, vector<2x128xf32>
    tpu.vector_store %arg4[%c0_8, %c0_9], %8 {strides = array<i32>} : memref<2x128xf32, #tpu.memory_space<vmem>>, vector<2x128xf32>,
    return
  }
  func.func @transform_0(%arg0: i32) -> (i32, i32, i32) {
    %c0_i32 = arith.constant 0 : i32
    %c0_i32_0 = arith.constant 0 : i32
    %c0_i32_1 = arith.constant 0 : i32
    return %arg0, %c0_i32, %c0_i32_0 : i32, i32, i32
  }
  func.func @transform_1(%arg0: i32) -> (i32, i32) {
    %c0_i32 = arith.constant 0 : i32
    %c0_i32_0 = arith.constant 0 : i32
    %c0_i32_1 = arith.constant 0 : i32
    return %c0_i32, %c0_i32_0 : i32, i32
  }
  func.func @transform_2(%arg0: i32) -> (i32, i32) {
    %c0_i32 = arith.constant 0 : i32
    %c0_i32_0 = arith.constant 0 : i32
    return %arg0, %c0_i32 : i32, i32
  }
  func.func @transform_3(%arg0: i32) -> (i32, i32) {
    %c0_i32 = arith.constant 0 : i32
    %c0_i32_0 = arith.constant 0 : i32
    return %arg0, %c0_i32 : i32, i32
  }
}

</mosaic_0001>

<llo_original>
// kernel: reverse
$region0: #{reverse}
  #allocation0 [shape = 's32[1]{0}', space=sflag, size = 0x4, scoped, tag = 'scoped memory for reverse']
  %s0 = inlined_call_operand.vmem [shape: f32[3,3,512,512], index: 0, kind: input, shape index: {}]
  %s1 = inlined_call_operand.vmem [shape: bf16[3,3,512,512], index: 1, kind: output, shape index: {}]
  loop: start=0, step=1, limit=28
  $region2: #{reverse} parent=0 // loop_pre_header
    _
  $region3: #{reverse} parent=0 // loop_header
    %s3 = sphi 0, %s7
    %p4 = scmp.ge.s32.totalorder %s3, 28
    %s18 = sphi 0, %s76
    %s19 = sphi 0, %s72
    %s20 = sphi 0, %s68
    %s21 = sphi 0, %s64
    %s22 = sphi 0, %s18
    %s23 = sphi 0, %s19
    %s24 = sphi 0, %s20
    %s25 = sphi 0, %s21
    %s26 = sphi 0, %s22
    %s27 = sphi 0, %s23
    %s28 = sphi 0, %s24
    %s29 = sphi 0, %s25
    %s30 = sphi 0, %s26
    %s31 = sphi 0, %s27
    %s32 = sphi 0, %s28
    %s33 = sphi 0, %s29
    %s34 = sphi 0, %s30
    %s35 = sphi 0, %s31
    %s36 = sphi 0, %s32
    %s37 = sphi 0, %s33
    %s38 = sphi 0, %s34
    %s39 = sphi 0, %s35
    %s40 = sphi 0, %s36
    %s41 = sphi 0, %s37
    %s42 = sphi 0, %s38
    %s43 = sphi 0, %s39
    %s44 = sphi 0, %s40
    %s45 = sphi 0, %s41
    %s46 = sphi 0, %s42
    %s47 = sphi 0, %s43
    %s48 = sphi 0, %s44
    %s49 = sphi 0, %s45
    %s50 = sphi 0, %s46
    %s51 = sphi 0, %s47
    %s52 = sphi 0, %s48
    %s53 = sphi 0, %s49
    %s54 = sphi 0, %s50
    %s55 = sphi 0, %s51
    %s56 = sphi 0, %s52
    %s57 = sphi 0, %s53
    %s58 = sphi 0, %s54
    %s59 = sphi 0, %s55
    %s60 = sphi 0, %s56
    %s61 = sphi 0, %s57
  $region4: #{reverse} parent=0 // loop_header_branch
    %6 = sbr.rel (%p4) target = $region8
  $region5: #{reverse} parent=0 // loop_body
    %s8 = ssub.s32 %s3, 1
    %s9 = ssub.s32 %s3, 2
    %s10 = ssub.s32 %s3, 3
    %s11 = ssub.s32 %s3, 4
    %s12 = ssub.s32 %s3, 5
    %s13 = ssub.s32 %s3, 6
    %s14 = ssub.s32 %s3, 7
    %s15 = ssub.s32 %s3, 8
    %s16 = ssub.s32 %s3, 9
    %s17 = ssub.s32 %s3, 10
    %s62 = sadd.s32 1, %s21
    %p63 = scmp.ge.s32.totalorder %s62, 1
    %s64 = scalar_select %p63, 0, %s62
    %s65 = sadd.s32 1, %s20
    %s66 = scalar_select %p63, %s65, %s20
    %p67 = scmp.ge.s32.totalorder %s66, 2
    %s68 = scalar_select %p67, 0, %s66
    %s69 = sadd.s32 1, %s19
    %s70 = scalar_select %p67, %s69, %s19
    %p71 = scmp.ge.s32.totalorder %s70, 3
    %s72 = scalar_select %p71, 0, %s70
    %s73 = sadd.s32 1, %s18
    %s74 = scalar_select %p71, %s73, %s18
    %p75 = scmp.ge.s32.totalorder %s74, 3
    %s76 = scalar_select %p75, 0, %s74
    %p77 = scmp.le.s32.totalorder 5, %s3
    %p78 = scmp.lt.s32.totalorder %s3, 23
    %p79 = pnand %p77, %p78
    %p80 = pneg %p79
    // Predicated region
    $region9: #{reverse} parent=5 // pred_check
      _
    $region10: #{reverse} parent=5 // pred_check_branch
      %82 = sbr.rel (%p79) target = $region12
    $region11: #{reverse} parent=5 // pred_region
      %s83 = ssub.s32 %s3, 5
    $region12: #{reverse} parent=5 // pred_fallthru
      _
    %p84 = scmp.lt.s32.totalorder %s3, 18
    // Predicated region
    $region13: #{reverse} parent=5 // pred_check
      %p85 = pneg %p84
    $region14: #{reverse} parent=5 // pred_check_branch
      %87 = sbr.rel (%p85) target = $region16
    $region15: #{reverse} parent=5 // pred_region
      %s88 = ssub.s32 2, %s18
      %s89 = ssub.s32 2, %s19
      %s90 = smul.u32 32, %s20
      %s91 = smul.u32 4, %s21
      %p92 = scmp.lt.s32.totalorder %s88, 2
      %s93 = scalar_select %p92, %s88, 2
      %p94 = scmp.lt.s32.totalorder %s89, 2
      %s95 = scalar_select %p94, %s89, 2
      %p96 = scmp.lt.s32.totalorder %s90, 63
      %s97 = scalar_select %p96, %s90, 63
      %p98 = scmp.lt.s32.totalorder %s91, 3
      %s99 = scalar_select %p98, %s91, 3
      %s100 = smul.addr %s97, 4
      %s101 = sadd.s32 %s99, %s100
      %s102 = smul.addr %s95, 256
      %s103 = sadd.s32 %s101, %s102
      %s104 = smul.addr %s93, 768
      %s105 = sadd.s32 %s103, %s104
      %s106 = smul.addr %s105, 8
      %s107 = scalar_lea.vmem %s0, %s106
      %s108 = ssub.s32 2, %s18
      %s109 = ssub.s32 2, %s19
      %s110 = smul.u32 32, %s20
      %s111 = smul.u32 4, %s21
    $region16: #{reverse} parent=5 // pred_fallthru
      _
    %p112 = scmp.le.s32.totalorder 5, %s3
    %p113 = scmp.lt.s32.totalorder %s3, 23
    %p114 = pnand %p112, %p113
    %p115 = pneg %p114
    // Predicated region
    $region17: #{reverse} parent=5 // pred_check
      _
    $region18: #{reverse} parent=5 // pred_check_branch
      %117 = sbr.rel (%p114) target = $region20
    $region19: #{reverse} parent=5 // pred_region
      %s118 = ssub.s32 %s3, 5
      %s119 = ssub.s32 2, %s38
      %s120 = ssub.s32 2, %s39
      %s121 = smul.u32 32, %s40
      %s122 = smul.u32 4, %s41
      %p123 = scmp.lt.s32.totalorder %s119, 2
      %s124 = scalar_select %p123, %s119, 2
      %p125 = scmp.lt.s32.totalorder %s120, 2
      %s126 = scalar_select %p125, %s120, 2
      %p127 = scmp.lt.s32.totalorder %s121, 63
      %s128 = scalar_select %p127, %s121, 63
      %p129 = scmp.lt.s32.totalorder %s122, 3
      %s130 = scalar_select %p129, %s122, 3
      %s131 = smul.addr %s128, 4
      %s132 = sadd.s32 %s130, %s131
      %s133 = smul.addr %s126, 256
      %s134 = sadd.s32 %s132, %s133
      %s135 = smul.addr %s124, 768
      %s136 = sadd.s32 %s134, %s135
      %s137 = smul.addr %s136, 8
      %s138 = scalar_lea.vmem %s0, %s137
      %s139 = smul.u32 32, %s40
      %s140 = smul.u32 4, %s41
      %p141 = scmp.lt.s32.totalorder %s38, 2
      %s142 = scalar_select %p141, %s38, 2
      %p143 = scmp.lt.s32.totalorder %s39, 2
      %s144 = scalar_select %p143, %s39, 2
      %p145 = scmp.lt.s32.totalorder %s139, 63
      %s146 = scalar_select %p145, %s139, 63
      %p147 = scmp.lt.s32.totalorder %s140, 3
      %s148 = scalar_select %p147, %s140, 3
      %s149 = smul.addr %s146, 4
      %s150 = sadd.s32 %s148, %s149
      %s151 = smul.addr %s144, 256
      %s152 = sadd.s32 %s150, %s151
      %s153 = smul.addr %s142, 768
      %s154 = sadd.s32 %s152, %s153
      %s155 = smul.addr %s154, 4
      %s156 = scalar_lea.vmem %s1, %s155
      %s157 = smul.u32 32, %s40
      %s158 = smul.u32 4, %s41
      %s159 = ssub.s32 2, %s38
      %s160 = ssub.s32 2, %s39
      %s161 = smul.u32 32, %s40
      %s162 = smul.u32 4, %s41
      %p163 = scmp.lt.s32.totalorder %s159, 2
      %s164 = scalar_select %p163, %s159, 2
      %p165 = scmp.lt.s32.totalorder %s160, 2
      %s166 = scalar_select %p165, %s160, 2
      %p167 = scmp.lt.s32.totalorder %s161, 63
      %s168 = scalar_select %p167, %s161, 63
      %p169 = scmp.lt.s32.totalorder %s162, 3
      %s170 = scalar_select %p169, %s162, 3
      %s171 = smul.addr %s168, 4
      %s172 = sadd.s32 %s170, %s171
      %s173 = smul.addr %s166, 256
      %s174 = sadd.s32 %s172, %s173
      %s175 = smul.addr %s164, 768
      %s176 = sadd.s32 %s174, %s175
      %s177 = smul.addr %s176, 8
      %s178 = scalar_lea.vmem %s0, %s177
      %s179 = ssub.s32 2, %s38
      %s180 = ssub.s32 2, %s39
      %s181 = smul.u32 32, %s40
      %s182 = smul.u32 4, %s41
      %s183 = smul.u32 32, %s40
      %s184 = smul.u32 4, %s41
      %p185 = scmp.lt.s32.totalorder %s38, 2
      %s186 = scalar_select %p185, %s38, 2
      %p187 = scmp.lt.s32.totalorder %s39, 2
      %s188 = scalar_select %p187, %s39, 2
      %p189 = scmp.lt.s32.totalorder %s183, 63
      %s190 = scalar_select %p189, %s183, 63
      %p191 = scmp.lt.s32.totalorder %s184, 3
      %s192 = scalar_select %p191, %s184, 3
      %s193 = smul.addr %s190, 4
      %s194 = sadd.s32 %s192, %s193
      %s195 = smul.addr %s188, 256
      %s196 = sadd.s32 %s194, %s195
      %s197 = smul.addr %s186, 768
      %s198 = sadd.s32 %s196, %s197
      %s199 = smul.addr %s198, 4
      %s200 = scalar_lea.vmem %s1, %s199
      %s201 = smul.u32 32, %s40
      %s202 = smul.u32 4, %s41
      %v203 = vld [vmem:[%s178] sm:$0xff]
      %s204 = scalar_lea.vmem %s178, 32
      %v205 = vld [vmem:[%s204] sm:$0xff]
      %s206 = scalar_lea.vmem %s200, 16
      %s207 = scalar_lea.vmem %s178, 64
      %v208 = vld [vmem:[%s207] sm:$0xff]
      %s209 = scalar_lea.vmem %s200, 32
      %s210 = scalar_lea.vmem %s178, 96
      %v211 = vld [vmem:[%s210] sm:$0xff]
      %s212 = scalar_lea.vmem %s200, 48
      %s213 = scalar_lea.vmem %s178, 128
      %v214 = vld [vmem:[%s213] sm:$0xff]
      %s215 = scalar_lea.vmem %s200, 64
      %s216 = scalar_lea.vmem %s178, 160
      %v217 = vld [vmem:[%s216] sm:$0xff]
      %s218 = scalar_lea.vmem %s200, 80
      %s219 = scalar_lea.vmem %s178, 192
      %v220 = vld [vmem:[%s219] sm:$0xff]
      %s221 = scalar_lea.vmem %s200, 96
      %s222 = scalar_lea.vmem %s178, 224
      %v223 = vld [vmem:[%s222] sm:$0xff]
      %s224 = scalar_lea.vmem %s200, 112
      %s225 = scalar_lea.vmem %s178, 256
      %v226 = vld [vmem:[%s225] sm:$0xff]
      %s227 = scalar_lea.vmem %s200, 128
      %s228 = scalar_lea.vmem %s178, 288
      %v229 = vld [vmem:[%s228] sm:$0xff]
      %s230 = scalar_lea.vmem %s200, 144
      %s231 = scalar_lea.vmem %s178, 320
      %v232 = vld [vmem:[%s231] sm:$0xff]
      %s233 = scalar_lea.vmem %s200, 160
      %s234 = scalar_lea.vmem %s178, 352
      %v235 = vld [vmem:[%s234] sm:$0xff]
      %s236 = scalar_lea.vmem %s200, 176
      %s237 = scalar_lea.vmem %s178, 384
      %v238 = vld [vmem:[%s237] sm:$0xff]
      %s239 = scalar_lea.vmem %s200, 192
      %s240 = scalar_lea.vmem %s178, 416
      %v241 = vld [vmem:[%s240] sm:$0xff]
      %s242 = scalar_lea.vmem %s200, 208
      %s243 = scalar_lea.vmem %s178, 448
      %v244 = vld [vmem:[%s243] sm:$0xff]
      %s245 = scalar_lea.vmem %s200, 224
      %s246 = scalar_lea.vmem %s178, 480
      %v247 = vld [vmem:[%s246] sm:$0xff]
      %s248 = scalar_lea.vmem %s200, 240
      %s249 = scalar_lea.vmem %s178, 512
      %v250 = vld [vmem:[%s249] sm:$0xff]
      %s251 = scalar_lea.vmem %s200, 256
      %s252 = scalar_lea.vmem %s178, 544
      %v253 = vld [vmem:[%s252] sm:$0xff]
      %s254 = scalar_lea.vmem %s200, 272
      %s255 = scalar_lea.vmem %s178, 576
      %v256 = vld [vmem:[%s255] sm:$0xff]
      %s257 = scalar_lea.vmem %s200, 288
      %s258 = scalar_lea.vmem %s178, 608
      %v259 = vld [vmem:[%s258] sm:$0xff]
      %s260 = scalar_lea.vmem %s200, 304
      %s261 = scalar_lea.vmem %s178, 640
      %v262 = vld [vmem:[%s261] sm:$0xff]
      %s263 = scalar_lea.vmem %s200, 320
      %s264 = scalar_lea.vmem %s178, 672
      %v265 = vld [vmem:[%s264] sm:$0xff]
      %s266 = scalar_lea.vmem %s200, 336
      %s267 = scalar_lea.vmem %s178, 704
      %v268 = vld [vmem:[%s267] sm:$0xff]
      %s269 = scalar_lea.vmem %s200, 352
      %s270 = scalar_lea.vmem %s178, 736
      %v271 = vld [vmem:[%s270] sm:$0xff]
      %s272 = scalar_lea.vmem %s200, 368
      %s273 = scalar_lea.vmem %s178, 768
      %v274 = vld [vmem:[%s273] sm:$0xff]
      %s275 = scalar_lea.vmem %s200, 384
      %s276 = scalar_lea.vmem %s178, 800
      %v277 = vld [vmem:[%s276] sm:$0xff]
      %s278 = scalar_lea.vmem %s200, 400
      %s279 = scalar_lea.vmem %s178, 832
      %v280 = vld [vmem:[%s279] sm:$0xff]
      %s281 = scalar_lea.vmem %s200, 416
      %s282 = scalar_lea.vmem %s178, 864
      %v283 = vld [vmem:[%s282] sm:$0xff]
      %s284 = scalar_lea.vmem %s200, 432
      %s285 = scalar_lea.vmem %s178, 896
      %v286 = vld [vmem:[%s285] sm:$0xff]
      %s287 = scalar_lea.vmem %s200, 448
      %s288 = scalar_lea.vmem %s178, 928
      %v289 = vld [vmem:[%s288] sm:$0xff]
      %s290 = scalar_lea.vmem %s200, 464
      %s291 = scalar_lea.vmem %s178, 960
      %v292 = vld [vmem:[%s291] sm:$0xff]
      %s293 = scalar_lea.vmem %s200, 480
      %s294 = scalar_lea.vmem %s178, 992
      %v295 = vld [vmem:[%s294] sm:$0xff]
      %s296 = scalar_lea.vmem %s200, 496
      %s297 = scalar_lea.vmem %s178, 8
      %v298 = vld [vmem:[%s297] sm:$0xff]
      %s299 = scalar_lea.vmem %s200, 4
      %s300 = scalar_lea.vmem %s299, 4294967292
      %v301 = vpack.c.bf16 %v298, %v203
      %302 = vst [vmem:[%s300] sm:$0xff] %v301
      %s303 = scalar_lea.vmem %s178, 40
      %v304 = vld [vmem:[%s303] sm:$0xff]
      %s305 = scalar_lea.vmem %s200, 20
      %s306 = scalar_lea.vmem %s305, 4294967292
      %v307 = vpack.c.bf16 %v304, %v205
      %308 = vst [vmem:[%s306] sm:$0xff] %v307
      %s309 = scalar_lea.vmem %s178, 72
      %v310 = vld [vmem:[%s309] sm:$0xff]
      %s311 = scalar_lea.vmem %s200, 36
      %s312 = scalar_lea.vmem %s311, 4294967292
      %v313 = vpack.c.bf16 %v310, %v208
      %314 = vst [vmem:[%s312] sm:$0xff] %v313
      %s315 = scalar_lea.vmem %s178, 104
      %v316 = vld [vmem:[%s315] sm:$0xff]
      %s317 = scalar_lea.vmem %s200, 52
      %s318 = scalar_lea.vmem %s317, 4294967292
      %v319 = vpack.c.bf16 %v316, %v211
      %320 = vst [vmem:[%s318] sm:$0xff] %v319
      %s321 = scalar_lea.vmem %s178, 136
      %v322 = vld [vmem:[%s321] sm:$0xff]
      %s323 = scalar_lea.vmem %s200, 68
      %s324 = scalar_lea.vmem %s323, 4294967292
      %v325 = vpack.c.bf16 %v322, %v214
      %326 = vst [vmem:[%s324] sm:$0xff] %v325
      %s327 = scalar_lea.vmem %s178, 168
      %v328 = vld [vmem:[%s327] sm:$0xff]
      %s329 = scalar_lea.vmem %s200, 84
      %s330 = scalar_lea.vmem %s329, 4294967292
      %v331 = vpack.c.bf16 %v328, %v217
      %332 = vst [vmem:[%s330] sm:$0xff] %v331
      %s333 = scalar_lea.vmem %s178, 200
      %v334 = vld [vmem:[%s333] sm:$0xff]
      %s335 = scalar_lea.vmem %s200, 100
      %s336 = scalar_lea.vmem %s335, 4294967292
      %v337 = vpack.c.bf16 %v334, %v220
      %338 = vst [vmem:[%s336] sm:$0xff] %v337
      %s339 = scalar_lea.vmem %s178, 232
      %v340 = vld [vmem:[%s339] sm:$0xff]
      %s341 = scalar_lea.vmem %s200, 116
      %s342 = scalar_lea.vmem %s341, 4294967292
      %v343 = vpack.c.bf16 %v340, %v223
      %344 = vst [vmem:[%s342] sm:$0xff] %v343
      %s345 = scalar_lea.vmem %s178, 264
      %v346 = vld [vmem:[%s345] sm:$0xff]
      %s347 = scalar_lea.vmem %s200, 132
      %s348 = scalar_lea.vmem %s347, 4294967292
      %v349 = vpack.c.bf16 %v346, %v226
      %350 = vst [vmem:[%s348] sm:$0xff] %v349
      %s351 = scalar_lea.vmem %s178, 296
      %v352 = vld [vmem:[%s351] sm:$0xff]
      %s353 = scalar_lea.vmem %s200, 148
      %s354 = scalar_lea.vmem %s353, 4294967292
      %v355 = vpack.c.bf16 %v352, %v229
      %356 = vst [vmem:[%s354] sm:$0xff] %v355
      %s357 = scalar_lea.vmem %s178, 328
      %v358 = vld [vmem:[%s357] sm:$0xff]
      %s359 = scalar_lea.vmem %s200, 164
      %s360 = scalar_lea.vmem %s359, 4294967292
      %v361 = vpack.c.bf16 %v358, %v232
      %362 = vst [vmem:[%s360] sm:$0xff] %v361
      %s363 = scalar_lea.vmem %s178, 360
      %v364 = vld [vmem:[%s363] sm:$0xff]
      %s365 = scalar_lea.vmem %s200, 180
      %s366 = scalar_lea.vmem %s365, 4294967292
      %v367 = vpack.c.bf16 %v364, %v235
      %368 = vst [vmem:[%s366] sm:$0xff] %v367
      %s369 = scalar_lea.vmem %s178, 392
      %v370 = vld [vmem:[%s369] sm:$0xff]
      %s371 = scalar_lea.vmem %s200, 196
      %s372 = scalar_lea.vmem %s371, 4294967292
      %v373 = vpack.c.bf16 %v370, %v238
      %374 = vst [vmem:[%s372] sm:$0xff] %v373
      %s375 = scalar_lea.vmem %s178, 424
      %v376 = vld [vmem:[%s375] sm:$0xff]
      %s377 = scalar_lea.vmem %s200, 212
      %s378 = scalar_lea.vmem %s377, 4294967292
      %v379 = vpack.c.bf16 %v376, %v241
      %380 = vst [vmem:[%s378] sm:$0xff] %v379
      %s381 = scalar_lea.vmem %s178, 456
      %v382 = vld [vmem:[%s381] sm:$0xff]
      %s383 = scalar_lea.vmem %s200, 228
      %s384 = scalar_lea.vmem %s383, 4294967292
      %v385 = vpack.c.bf16 %v382, %v244
      %386 = vst [vmem:[%s384] sm:$0xff] %v385
      %s387 = scalar_lea.vmem %s178, 488
      %v388 = vld [vmem:[%s387] sm:$0xff]
      %s389 = scalar_lea.vmem %s200, 244
      %s390 = scalar_lea.vmem %s389, 4294967292
      %v391 = vpack.c.bf16 %v388, %v247
      %392 = vst [vmem:[%s390] sm:$0xff] %v391
      %s393 = scalar_lea.vmem %s178, 520
      %v394 = vld [vmem:[%s393] sm:$0xff]
      %s395 = scalar_lea.vmem %s200, 260
      %s396 = scalar_lea.vmem %s395, 4294967292
      %v397 = vpack.c.bf16 %v394, %v250
      %398 = vst [vmem:[%s396] sm:$0xff] %v397
      %s399 = scalar_lea.vmem %s178, 552
      %v400 = vld [vmem:[%s399] sm:$0xff]
      %s401 = scalar_lea.vmem %s200, 276
      %s402 = scalar_lea.vmem %s401, 4294967292
      %v403 = vpack.c.bf16 %v400, %v253
      %404 = vst [vmem:[%s402] sm:$0xff] %v403
      %s405 = scalar_lea.vmem %s178, 584
      %v406 = vld [vmem:[%s405] sm:$0xff]
      %s407 = scalar_lea.vmem %s200, 292
      %s408 = scalar_lea.vmem %s407, 4294967292
      %v409 = vpack.c.bf16 %v406, %v256
      %410 = vst [vmem:[%s408] sm:$0xff] %v409
      %s411 = scalar_lea.vmem %s178, 616
      %v412 = vld [vmem:[%s411] sm:$0xff]
      %s413 = scalar_lea.vmem %s200, 308
      %s414 = scalar_lea.vmem %s413, 4294967292
      %v415 = vpack.c.bf16 %v412, %v259
      %416 = vst [vmem:[%s414] sm:$0xff] %v415
      %s417 = scalar_lea.vmem %s178, 648
      %v418 = vld [vmem:[%s417] sm:$0xff]
      %s419 = scalar_lea.vmem %s200, 324
      %s420 = scalar_lea.vmem %s419, 4294967292
      %v421 = vpack.c.bf16 %v418, %v262
      %422 = vst [vmem:[%s420] sm:$0xff] %v421
      %s423 = scalar_lea.vmem %s178, 680
      %v424 = vld [vmem:[%s423] sm:$0xff]
      %s425 = scalar_lea.vmem %s200, 340
      %s426 = scalar_lea.vmem %s425, 4294967292
      %v427 = vpack.c.bf16 %v424, %v265
      %428 = vst [vmem:[%s426] sm:$0xff] %v427
      %s429 = scalar_lea.vmem %s178, 712
      %v430 = vld [vmem:[%s429] sm:$0xff]
      %s431 = scalar_lea.vmem %s200, 356
      %s432 = scalar_lea.vmem %s431, 4294967292
      %v433 = vpack.c.bf16 %v430, %v268
      %434 = vst [vmem:[%s432] sm:$0xff] %v433
      %s435 = scalar_lea.vmem %s178, 744
      %v436 = vld [vmem:[%s435] sm:$0xff]
      %s437 = scalar_lea.vmem %s200, 372
      %s438 = scalar_lea.vmem %s437, 4294967292
      %v439 = vpack.c.bf16 %v436, %v271
      %440 = vst [vmem:[%s438] sm:$0xff] %v439
      %s441 = scalar_lea.vmem %s178, 776
      %v442 = vld [vmem:[%s441] sm:$0xff]
      %s443 = scalar_lea.vmem %s200, 388
      %s444 = scalar_lea.vmem %s443, 4294967292
      %v445 = vpack.c.bf16 %v442, %v274
      %446 = vst [vmem:[%s444] sm:$0xff] %v445
      %s447 = scalar_lea.vmem %s178, 808
      %v448 = vld [vmem:[%s447] sm:$0xff]
      %s449 = scalar_lea.vmem %s200, 404
      %s450 = scalar_lea.vmem %s449, 4294967292
      %v451 = vpack.c.bf16 %v448, %v277
      %452 = vst [vmem:[%s450] sm:$0xff] %v451
      %s453 = scalar_lea.vmem %s178, 840
      %v454 = vld [vmem:[%s453] sm:$0xff]
      %s455 = scalar_lea.vmem %s200, 420
      %s456 = scalar_lea.vmem %s455, 4294967292
      %v457 = vpack.c.bf16 %v454, %v280
      %458 = vst [vmem:[%s456] sm:$0xff] %v457
      %s459 = scalar_lea.vmem %s178, 872
      %v460 = vld [vmem:[%s459] sm:$0xff]
      %s461 = scalar_lea.vmem %s200, 436
      %s462 = scalar_lea.vmem %s461, 4294967292
      %v463 = vpack.c.bf16 %v460, %v283
      %464 = vst [vmem:[%s462] sm:$0xff] %v463
      %s465 = scalar_lea.vmem %s178, 904
      %v466 = vld [vmem:[%s465] sm:$0xff]
      %s467 = scalar_lea.vmem %s200, 452
      %s468 = scalar_lea.vmem %s467, 4294967292
      %v469 = vpack.c.bf16 %v466, %v286
      %470 = vst [vmem:[%s468] sm:$0xff] %v469
      %s471 = scalar_lea.vmem %s178, 936
      %v472 = vld [vmem:[%s471] sm:$0xff]
      %s473 = scalar_lea.vmem %s200, 468
      %s474 = scalar_lea.vmem %s473, 4294967292
      %v475 = vpack.c.bf16 %v472, %v289
      %476 = vst [vmem:[%s474] sm:$0xff] %v475
      %s477 = scalar_lea.vmem %s178, 968
      %v478 = vld [vmem:[%s477] sm:$0xff]
      %s479 = scalar_lea.vmem %s200, 484
      %s480 = scalar_lea.vmem %s479, 4294967292
      %v481 = vpack.c.bf16 %v478, %v292
      %482 = vst [vmem:[%s480] sm:$0xff] %v481
      %s483 = scalar_lea.vmem %s178, 1000
      %v484 = vld [vmem:[%s483] sm:$0xff]
      %s485 = scalar_lea.vmem %s200, 500
      %s486 = scalar_lea.vmem %s485, 4294967292
      %v487 = vpack.c.bf16 %v484, %v295
      %488 = vst [vmem:[%s486] sm:$0xff] %v487
      %s489 = scalar_lea.vmem %s178, 16
      %v490 = vld [vmem:[%s489] sm:$0xff]
      %s491 = scalar_lea.vmem %s200, 8
      %s492 = scalar_lea.vmem %s178, 48
      %v493 = vld [vmem:[%s492] sm:$0xff]
      %s494 = scalar_lea.vmem %s200, 24
      %s495 = scalar_lea.vmem %s178, 80
      %v496 = vld [vmem:[%s495] sm:$0xff]
      %s497 = scalar_lea.vmem %s200, 40
      %s498 = scalar_lea.vmem %s178, 112
      %v499 = vld [vmem:[%s498] sm:$0xff]
      %s500 = scalar_lea.vmem %s200, 56
      %s501 = scalar_lea.vmem %s178, 144
      %v502 = vld [vmem:[%s501] sm:$0xff]
      %s503 = scalar_lea.vmem %s200, 72
      %s504 = scalar_lea.vmem %s178, 176
      %v505 = vld [vmem:[%s504] sm:$0xff]
      %s506 = scalar_lea.vmem %s200, 88
      %s507 = scalar_lea.vmem %s178, 208
      %v508 = vld [vmem:[%s507] sm:$0xff]
      %s509 = scalar_lea.vmem %s200, 104
      %s510 = scalar_lea.vmem %s178, 240
      %v511 = vld [vmem:[%s510] sm:$0xff]
      %s512 = scalar_lea.vmem %s200, 120
      %s513 = scalar_lea.vmem %s178, 272
      %v514 = vld [vmem:[%s513] sm:$0xff]
      %s515 = scalar_lea.vmem %s200, 136
      %s516 = scalar_lea.vmem %s178, 304
      %v517 = vld [vmem:[%s516] sm:$0xff]
      %s518 = scalar_lea.vmem %s200, 152
      %s519 = scalar_lea.vmem %s178, 336
      %v520 = vld [vmem:[%s519] sm:$0xff]
      %s521 = scalar_lea.vmem %s200, 168
      %s522 = scalar_lea.vmem %s178, 368
      %v523 = vld [vmem:[%s522] sm:$0xff]
      %s524 = scalar_lea.vmem %s200, 184
      %s525 = scalar_lea.vmem %s178, 400
      %v526 = vld [vmem:[%s525] sm:$0xff]
      %s527 = scalar_lea.vmem %s200, 200
      %s528 = scalar_lea.vmem %s178, 432
      %v529 = vld [vmem:[%s528] sm:$0xff]
      %s530 = scalar_lea.vmem %s200, 216
      %s531 = scalar_lea.vmem %s178, 464
      %v532 = vld [vmem:[%s531] sm:$0xff]
      %s533 = scalar_lea.vmem %s200, 232
      %s534 = scalar_lea.vmem %s178, 496
      %v535 = vld [vmem:[%s534] sm:$0xff]
      %s536 = scalar_lea.vmem %s200, 248
      %s537 = scalar_lea.vmem %s178, 528
      %v538 = vld [vmem:[%s537] sm:$0xff]
      %s539 = scalar_lea.vmem %s200, 264
      %s540 = scalar_lea.vmem %s178, 560
      %v541 = vld [vmem:[%s540] sm:$0xff]
      %s542 = scalar_lea.vmem %s200, 280
      %s543 = scalar_lea.vmem %s178, 592
      %v544 = vld [vmem:[%s543] sm:$0xff]
      %s545 = scalar_lea.vmem %s200, 296
      %s546 = scalar_lea.vmem %s178, 624
      %v547 = vld [vmem:[%s546] sm:$0xff]
      %s548 = scalar_lea.vmem %s200, 312
      %s549 = scalar_lea.vmem %s178, 656
      %v550 = vld [vmem:[%s549] sm:$0xff]
      %s551 = scalar_lea.vmem %s200, 328
      %s552 = scalar_lea.vmem %s178, 688
      %v553 = vld [vmem:[%s552] sm:$0xff]
      %s554 = scalar_lea.vmem %s200, 344
      %s555 = scalar_lea.vmem %s178, 720
      %v556 = vld [vmem:[%s555] sm:$0xff]
      %s557 = scalar_lea.vmem %s200, 360
      %s558 = scalar_lea.vmem %s178, 752
      %v559 = vld [vmem:[%s558] sm:$0xff]
      %s560 = scalar_lea.vmem %s200, 376
      %s561 = scalar_lea.vmem %s178, 784
      %v562 = vld [vmem:[%s561] sm:$0xff]
      %s563 = scalar_lea.vmem %s200, 392
      %s564 = scalar_lea.vmem %s178, 816
      %v565 = vld [vmem:[%s564] sm:$0xff]
      %s566 = scalar_lea.vmem %s200, 408
      %s567 = scalar_lea.vmem %s178, 848
      %v568 = vld [vmem:[%s567] sm:$0xff]
      %s569 = scalar_lea.vmem %s200, 424
      %s570 = scalar_lea.vmem %s178, 880
      %v571 = vld [vmem:[%s570] sm:$0xff]
      %s572 = scalar_lea.vmem %s200, 440
      %s573 = scalar_lea.vmem %s178, 912
      %v574 = vld [vmem:[%s573] sm:$0xff]
      %s575 = scalar_lea.vmem %s200, 456
      %s576 = scalar_lea.vmem %s178, 944
      %v577 = vld [vmem:[%s576] sm:$0xff]
      %s578 = scalar_lea.vmem %s200, 472
      %s579 = scalar_lea.vmem %s178, 976
      %v580 = vld [vmem:[%s579] sm:$0xff]
      %s581 = scalar_lea.vmem %s200, 488
      %s582 = scalar_lea.vmem %s178, 1008
      %v583 = vld [vmem:[%s582] sm:$0xff]
      %s584 = scalar_lea.vmem %s200, 504
      %s585 = scalar_lea.vmem %s178, 24
      %v586 = vld [vmem:[%s585] sm:$0xff]
      %s587 = scalar_lea.vmem %s200, 12
      %s588 = scalar_lea.vmem %s587, 4294967292
      %v589 = vpack.c.bf16 %v586, %v490
      %590 = vst [vmem:[%s588] sm:$0xff] %v589
      %s591 = scalar_lea.vmem %s178, 56
      %v592 = vld [vmem:[%s591] sm:$0xff]
      %s593 = scalar_lea.vmem %s200, 28
      %s594 = scalar_lea.vmem %s593, 4294967292
      %v595 = vpack.c.bf16 %v592, %v493
      %596 = vst [vmem:[%s594] sm:$0xff] %v595
      %s597 = scalar_lea.vmem %s178, 88
      %v598 = vld [vmem:[%s597] sm:$0xff]
      %s599 = scalar_lea.vmem %s200, 44
      %s600 = scalar_lea.vmem %s599, 4294967292
      %v601 = vpack.c.bf16 %v598, %v496
      %602 = vst [vmem:[%s600] sm:$0xff] %v601
      %s603 = scalar_lea.vmem %s178, 120
      %v604 = vld [vmem:[%s603] sm:$0xff]
      %s605 = scalar_lea.vmem %s200, 60
      %s606 = scalar_lea.vmem %s605, 4294967292
      %v607 = vpack.c.bf16 %v604, %v499
      %608 = vst [vmem:[%s606] sm:$0xff] %v607
      %s609 = scalar_lea.vmem %s178, 152
      %v610 = vld [vmem:[%s609] sm:$0xff]
      %s611 = scalar_lea.vmem %s200, 76
      %s612 = scalar_lea.vmem %s611, 4294967292
      %v613 = vpack.c.bf16 %v610, %v502
      %614 = vst [vmem:[%s612] sm:$0xff] %v613
      %s615 = scalar_lea.vmem %s178, 184
      %v616 = vld [vmem:[%s615] sm:$0xff]
      %s617 = scalar_lea.vmem %s200, 92
      %s618 = scalar_lea.vmem %s617, 4294967292
      %v619 = vpack.c.bf16 %v616, %v505
      %620 = vst [vmem:[%s618] sm:$0xff] %v619
      %s621 = scalar_lea.vmem %s178, 216
      %v622 = vld [vmem:[%s621] sm:$0xff]
      %s623 = scalar_lea.vmem %s200, 108
      %s624 = scalar_lea.vmem %s623, 4294967292
      %v625 = vpack.c.bf16 %v622, %v508
      %626 = vst [vmem:[%s624] sm:$0xff] %v625
      %s627 = scalar_lea.vmem %s178, 248
      %v628 = vld [vmem:[%s627] sm:$0xff]
      %s629 = scalar_lea.vmem %s200, 124
      %s630 = scalar_lea.vmem %s629, 4294967292
      %v631 = vpack.c.bf16 %v628, %v511
      %632 = vst [vmem:[%s630] sm:$0xff] %v631
      %s633 = scalar_lea.vmem %s178, 280
      %v634 = vld [vmem:[%s633] sm:$0xff]
      %s635 = scalar_lea.vmem %s200, 140
      %s636 = scalar_lea.vmem %s635, 4294967292
      %v637 = vpack.c.bf16 %v634, %v514
      %638 = vst [vmem:[%s636] sm:$0xff] %v637
      %s639 = scalar_lea.vmem %s178, 312
      %v640 = vld [vmem:[%s639] sm:$0xff]
      %s641 = scalar_lea.vmem %s200, 156
      %s642 = scalar_lea.vmem %s641, 4294967292
      %v643 = vpack.c.bf16 %v640, %v517
      %644 = vst [vmem:[%s642] sm:$0xff] %v643
      %s645 = scalar_lea.vmem %s178, 344
      %v646 = vld [vmem:[%s645] sm:$0xff]
      %s647 = scalar_lea.vmem %s200, 172
      %s648 = scalar_lea.vmem %s647, 4294967292
      %v649 = vpack.c.bf16 %v646, %v520
      %650 = vst [vmem:[%s648] sm:$0xff] %v649
      %s651 = scalar_lea.vmem %s178, 376
      %v652 = vld [vmem:[%s651] sm:$0xff]
      %s653 = scalar_lea.vmem %s200, 188
      %s654 = scalar_lea.vmem %s653, 4294967292
      %v655 = vpack.c.bf16 %v652, %v523
      %656 = vst [vmem:[%s654] sm:$0xff] %v655
      %s657 = scalar_lea.vmem %s178, 408
      %v658 = vld [vmem:[%s657] sm:$0xff]
      %s659 = scalar_lea.vmem %s200, 204
      %s660 = scalar_lea.vmem %s659, 4294967292
      %v661 = vpack.c.bf16 %v658, %v526
      %662 = vst [vmem:[%s660] sm:$0xff] %v661
      %s663 = scalar_lea.vmem %s178, 440
      %v664 = vld [vmem:[%s663] sm:$0xff]
      %s665 = scalar_lea.vmem %s200, 220
      %s666 = scalar_lea.vmem %s665, 4294967292
      %v667 = vpack.c.bf16 %v664, %v529
      %668 = vst [vmem:[%s666] sm:$0xff] %v667
      %s669 = scalar_lea.vmem %s178, 472
      %v670 = vld [vmem:[%s669] sm:$0xff]
      %s671 = scalar_lea.vmem %s200, 236
      %s672 = scalar_lea.vmem %s671, 4294967292
      %v673 = vpack.c.bf16 %v670, %v532
      %674 = vst [vmem:[%s672] sm:$0xff] %v673
      %s675 = scalar_lea.vmem %s178, 504
      %v676 = vld [vmem:[%s675] sm:$0xff]
      %s677 = scalar_lea.vmem %s200, 252
      %s678 = scalar_lea.vmem %s677, 4294967292
      %v679 = vpack.c.bf16 %v676, %v535
      %680 = vst [vmem:[%s678] sm:$0xff] %v679
      %s681 = scalar_lea.vmem %s178, 536
      %v682 = vld [vmem:[%s681] sm:$0xff]
      %s683 = scalar_lea.vmem %s200, 268
      %s684 = scalar_lea.vmem %s683, 4294967292
      %v685 = vpack.c.bf16 %v682, %v538
      %686 = vst [vmem:[%s684] sm:$0xff] %v685
      %s687 = scalar_lea.vmem %s178, 568
      %v688 = vld [vmem:[%s687] sm:$0xff]
      %s689 = scalar_lea.vmem %s200, 284
      %s690 = scalar_lea.vmem %s689, 4294967292
      %v691 = vpack.c.bf16 %v688, %v541
      %692 = vst [vmem:[%s690] sm:$0xff] %v691
      %s693 = scalar_lea.vmem %s178, 600
      %v694 = vld [vmem:[%s693] sm:$0xff]
      %s695 = scalar_lea.vmem %s200, 300
      %s696 = scalar_lea.vmem %s695, 4294967292
      %v697 = vpack.c.bf16 %v694, %v544
      %698 = vst [vmem:[%s696] sm:$0xff] %v697
      %s699 = scalar_lea.vmem %s178, 632
      %v700 = vld [vmem:[%s699] sm:$0xff]
      %s701 = scalar_lea.vmem %s200, 316
      %s702 = scalar_lea.vmem %s701, 4294967292
      %v703 = vpack.c.bf16 %v700, %v547
      %704 = vst [vmem:[%s702] sm:$0xff] %v703
      %s705 = scalar_lea.vmem %s178, 664
      %v706 = vld [vmem:[%s705] sm:$0xff]
      %s707 = scalar_lea.vmem %s200, 332
      %s708 = scalar_lea.vmem %s707, 4294967292
      %v709 = vpack.c.bf16 %v706, %v550
      %710 = vst [vmem:[%s708] sm:$0xff] %v709
      %s711 = scalar_lea.vmem %s178, 696
      %v712 = vld [vmem:[%s711] sm:$0xff]
      %s713 = scalar_lea.vmem %s200, 348
      %s714 = scalar_lea.vmem %s713, 4294967292
      %v715 = vpack.c.bf16 %v712, %v553
      %716 = vst [vmem:[%s714] sm:$0xff] %v715
      %s717 = scalar_lea.vmem %s178, 728
      %v718 = vld [vmem:[%s717] sm:$0xff]
      %s719 = scalar_lea.vmem %s200, 364
      %s720 = scalar_lea.vmem %s719, 4294967292
      %v721 = vpack.c.bf16 %v718, %v556
      %722 = vst [vmem:[%s720] sm:$0xff] %v721
      %s723 = scalar_lea.vmem %s178, 760
      %v724 = vld [vmem:[%s723] sm:$0xff]
      %s725 = scalar_lea.vmem %s200, 380
      %s726 = scalar_lea.vmem %s725, 4294967292
      %v727 = vpack.c.bf16 %v724, %v559
      %728 = vst [vmem:[%s726] sm:$0xff] %v727
      %s729 = scalar_lea.vmem %s178, 792
      %v730 = vld [vmem:[%s729] sm:$0xff]
      %s731 = scalar_lea.vmem %s200, 396
      %s732 = scalar_lea.vmem %s731, 4294967292
      %v733 = vpack.c.bf16 %v730, %v562
      %734 = vst [vmem:[%s732] sm:$0xff] %v733
      %s735 = scalar_lea.vmem %s178, 824
      %v736 = vld [vmem:[%s735] sm:$0xff]
      %s737 = scalar_lea.vmem %s200, 412
      %s738 = scalar_lea.vmem %s737, 4294967292
      %v739 = vpack.c.bf16 %v736, %v565
      %740 = vst [vmem:[%s738] sm:$0xff] %v739
      %s741 = scalar_lea.vmem %s178, 856
      %v742 = vld [vmem:[%s741] sm:$0xff]
      %s743 = scalar_lea.vmem %s200, 428
      %s744 = scalar_lea.vmem %s743, 4294967292
      %v745 = vpack.c.bf16 %v742, %v568
      %746 = vst [vmem:[%s744] sm:$0xff] %v745
      %s747 = scalar_lea.vmem %s178, 888
      %v748 = vld [vmem:[%s747] sm:$0xff]
      %s749 = scalar_lea.vmem %s200, 444
      %s750 = scalar_lea.vmem %s749, 4294967292
      %v751 = vpack.c.bf16 %v748, %v571
      %752 = vst [vmem:[%s750] sm:$0xff] %v751
      %s753 = scalar_lea.vmem %s178, 920
      %v754 = vld [vmem:[%s753] sm:$0xff]
      %s755 = scalar_lea.vmem %s200, 460
      %s756 = scalar_lea.vmem %s755, 4294967292
      %v757 = vpack.c.bf16 %v754, %v574
      %758 = vst [vmem:[%s756] sm:$0xff] %v757
      %s759 = scalar_lea.vmem %s178, 952
      %v760 = vld [vmem:[%s759] sm:$0xff]
      %s761 = scalar_lea.vmem %s200, 476
      %s762 = scalar_lea.vmem %s761, 4294967292
      %v763 = vpack.c.bf16 %v760, %v577
      %764 = vst [vmem:[%s762] sm:$0xff] %v763
      %s765 = scalar_lea.vmem %s178, 984
      %v766 = vld [vmem:[%s765] sm:$0xff]
      %s767 = scalar_lea.vmem %s200, 492
      %s768 = scalar_lea.vmem %s767, 4294967292
      %v769 = vpack.c.bf16 %v766, %v580
      %770 = vst [vmem:[%s768] sm:$0xff] %v769
      %s771 = scalar_lea.vmem %s178, 1016
      %v772 = vld [vmem:[%s771] sm:$0xff]
      %s773 = scalar_lea.vmem %s200, 508
      %s774 = scalar_lea.vmem %s773, 4294967292
      %v775 = vpack.c.bf16 %v772, %v583
      %776 = vst [vmem:[%s774] sm:$0xff] %v775
      %s777 = smul.u32 32, %s40
      %s778 = smul.u32 4, %s41
      %p779 = scmp.lt.s32.totalorder %s38, 2
      %s780 = scalar_select %p779, %s38, 2
      %p781 = scmp.lt.s32.totalorder %s39, 2
      %s782 = scalar_select %p781, %s39, 2
      %p783 = scmp.lt.s32.totalorder %s777, 63
      %s784 = scalar_select %p783, %s777, 63
      %p785 = scmp.lt.s32.totalorder %s778, 3
      %s786 = scalar_select %p785, %s778, 3
      %s787 = smul.addr %s784, 4
      %s788 = sadd.s32 %s786, %s787
      %s789 = smul.addr %s782, 256
      %s790 = sadd.s32 %s788, %s789
      %s791 = smul.addr %s780, 768
      %s792 = sadd.s32 %s790, %s791
      %s793 = smul.addr %s792, 4
      %s794 = scalar_lea.vmem %s1, %s793
      %s795 = smul.u32 32, %s40
      %s796 = smul.u32 4, %s41
    $region20: #{reverse} parent=5 // pred_fallthru
      _
    %p797 = scmp.le.s32.totalorder 10, %s3
    // Predicated region
    $region21: #{reverse} parent=5 // pred_check
      %p798 = pneg %p797
    $region22: #{reverse} parent=5 // pred_check_branch
      %800 = sbr.rel (%p798) target = $region24
    $region23: #{reverse} parent=5 // pred_region
      %s801 = ssub.s32 %s3, 10
      %s802 = smul.u32 32, %s60
      %s803 = smul.u32 4, %s61
      %p804 = scmp.lt.s32.totalorder %s58, 2
      %s805 = scalar_select %p804, %s58, 2
      %p806 = scmp.lt.s32.totalorder %s59, 2
      %s807 = scalar_select %p806, %s59, 2
      %p808 = scmp.lt.s32.totalorder %s802, 63
      %s809 = scalar_select %p808, %s802, 63
      %p810 = scmp.lt.s32.totalorder %s803, 3
      %s811 = scalar_select %p810, %s803, 3
      %s812 = smul.addr %s809, 4
      %s813 = sadd.s32 %s811, %s812
      %s814 = smul.addr %s807, 256
      %s815 = sadd.s32 %s813, %s814
      %s816 = smul.addr %s805, 768
      %s817 = sadd.s32 %s815, %s816
      %s818 = smul.addr %s817, 4
      %s819 = scalar_lea.vmem %s1, %s818
    $region24: #{reverse} parent=5 // pred_fallthru
      _
  $region6: #{reverse} parent=0 // loop_footer
    %s7 = sadd.s32 1, %s3
  $region7: #{reverse} parent=0 // loop_footer_branch
    %2 = sbr.rel target = $region3
  $region8: #{reverse} parent=0 // loop_exit
    _

// kernel: _lambda_.1
$region0: #{_lambda_.1}
  #allocation0 [shape = 'u32[]', space=smem, size = 0x4, offset = 0x4, fixed_abs, tag = 'smem constant byte address 0x4 - core index']
  #allocation1 [shape = 'u32[72,128]{1,0:T(1,128)}', space=vmem, size = 0x9000, scoped, tag = 'internal scratch']
  %s0 = inlined_call_operand.vmem [shape: bf16[2,16,2048], index: 0, kind: input, shape index: {}]
  %s1 = inlined_call_operand.vmem [shape: bf16[2048,128], index: 1, kind: input, shape index: {}]
  %s2 = inlined_call_operand.hbm [shape: f32[2,2048], index: 2, kind: output, shape index: {0}]
  %s3 = inlined_call_operand.hbm [shape: f32[2,128], index: 3, kind: output, shape index: {1}]
  %4 = xla_tuple %s2, %s3
  %s5 = sld [smem:[#allocation0]]
  $region26: #{_lambda_.1} parent=0
    _
  %s7 = ssub.s32 1, %s5
  %s8 = scalar_select 0, %s7, %s5
  $region1: #{_lambda_.1} parent=0
    #allocation2 [shape = 'u8[16384]{0}', space=vmem, size = 0x4000, scoped, tag = 'output window, operand 0, single buffered']
    #allocation3 [shape = 's32[1]{0}', space=sflag, size = 0x4, scoped, tag = 'scoped memory for _lambda_.1']
    #allocation4 [shape = 'u8[1024]{0}', space=vmem, size = 0x400, scoped, tag = 'output window, operand 1, single buffered']
    #allocation5 [shape = 's32[1]{0}', space=sflag, size = 0x4, scoped, tag = 'scoped memory for _lambda_.1']
    %9 = vsyncpa [#allocation3], 0
    %10 = vsyncpa [#allocation5], 0
    // Predicated region
    $region2: #{_lambda_.1} parent=1 // pred_check
      _
    $region3: #{_lambda_.1} parent=1 // pred_check_branch
      %12 = sbr.rel (0) target = $region5
    $region4: #{_lambda_.1} parent=1 // pred_region
      _
    $region5: #{_lambda_.1} parent=1 // pred_fallthru
      _
    // Predicated region
    $region6: #{_lambda_.1} parent=1 // pred_check
      _
    $region7: #{_lambda_.1} parent=1 // pred_check_branch
      %14 = sbr.rel (0) target = $region9
    $region8: #{_lambda_.1} parent=1 // pred_region
      _
    $region9: #{_lambda_.1} parent=1 // pred_fallthru
      _
    %v15 = vld [vmem:[%s0] sm:$0xff]
    %v16 = vld [vmem:[%s0 + $0x8] sm:$0xff]
    %v17 = vld [vmem:[%s0 + $0x10] sm:$0xff]
    %v18 = vld [vmem:[%s0 + $0x18] sm:$0xff]
    %v19 = vld [vmem:[%s0 + $0x20] sm:$0xff]
    %v20 = vld [vmem:[%s0 + $0x28] sm:$0xff]
    %v21 = vld [vmem:[%s0 + $0x30] sm:$0xff]
    %v22 = vld [vmem:[%s0 + $0x38] sm:$0xff]
    %v23 = vld [vmem:[%s0 + $0x40] sm:$0xff]
    %v24 = vld [vmem:[%s0 + $0x48] sm:$0xff]
    %v25 = vld [vmem:[%s0 + $0x50] sm:$0xff]
    %v26 = vld [vmem:[%s0 + $0x58] sm:$0xff]
    %v27 = vld [vmem:[%s0 + $0x60] sm:$0xff]
    %v28 = vld [vmem:[%s0 + $0x68] sm:$0xff]
    %v29 = vld [vmem:[%s0 + $0x70] sm:$0xff]
    %v30 = vld [vmem:[%s0 + $0x78] sm:$0xff]
    %v31 = vld [vmem:[%s0 + $0x80] sm:$0xff]
    %v32 = vld [vmem:[%s0 + $0x88] sm:$0xff]
    %v33 = vld [vmem:[%s0 + $0x90] sm:$0xff]
    %v34 = vld [vmem:[%s0 + $0x98] sm:$0xff]
    %v35 = vld [vmem:[%s0 + $0xa0] sm:$0xff]
    %v36 = vld [vmem:[%s0 + $0xa8] sm:$0xff]
    %v37 = vld [vmem:[%s0 + $0xb0] sm:$0xff]
    %v38 = vld [vmem:[%s0 + $0xb8] sm:$0xff]
    %v39 = vld [vmem:[%s0 + $0xc0] sm:$0xff]
    %v40 = vld [vmem:[%s0 + $0xc8] sm:$0xff]
    %v41 = vld [vmem:[%s0 + $0xd0] sm:$0xff]
    %v42 = vld [vmem:[%s0 + $0xd8] sm:$0xff]
    %v43 = vld [vmem:[%s0 + $0xe0] sm:$0xff]
    %v44 = vld [vmem:[%s0 + $0xe8] sm:$0xff]
    %v45 = vld [vmem:[%s0 + $0xf0] sm:$0xff]
    %v46 = vld [vmem:[%s0 + $0xf8] sm:$0xff]
    %v47 = vunpack.c.l.bf16 %v15
    %v48 = vunpack.c.h.bf16 %v15
    %v49 = vunpack.c.l.bf16 %v16
    %v50 = vunpack.c.h.bf16 %v16
    %v51 = vunpack.c.l.bf16 %v17
    %v52 = vunpack.c.h.bf16 %v17
    %v53 = vunpack.c.l.bf16 %v18
    %v54 = vunpack.c.h.bf16 %v18
    %v55 = vunpack.c.l.bf16 %v19
    %v56 = vunpack.c.h.bf16 %v19
    %v57 = vunpack.c.l.bf16 %v20
    %v58 = vunpack.c.h.bf16 %v20
    %v59 = vunpack.c.l.bf16 %v21
    %v60 = vunpack.c.h.bf16 %v21
    %v61 = vunpack.c.l.bf16 %v22
    %v62 = vunpack.c.h.bf16 %v22
    %v63 = vunpack.c.l.bf16 %v23
    %v64 = vunpack.c.h.bf16 %v23
    %v65 = vunpack.c.l.bf16 %v24
    %v66 = vunpack.c.h.bf16 %v24
    %v67 = vunpack.c.l.bf16 %v25
    %v68 = vunpack.c.h.bf16 %v25
    %v69 = vunpack.c.l.bf16 %v26
    %v70 = vunpack.c.h.bf16 %v26
    %v71 = vunpack.c.l.bf16 %v27
    %v72 = vunpack.c.h.bf16 %v27
    %v73 = vunpack.c.l.bf16 %v28
    %v74 = vunpack.c.h.bf16 %v28
    %v75 = vunpack.c.l.bf16 %v29
    %v76 = vunpack.c.h.bf16 %v29
    %v77 = vunpack.c.l.bf16 %v30
    %v78 = vunpack.c.h.bf16 %v30
    %v79 = vunpack.c.l.bf16 %v31
    %v80 = vunpack.c.h.bf16 %v31
    %v81 = vunpack.c.l.bf16 %v32
    %v82 = vunpack.c.h.bf16 %v32
    %v83 = vunpack.c.l.bf16 %v33
    %v84 = vunpack.c.h.bf16 %v33
    %v85 = vunpack.c.l.bf16 %v34
    %v86 = vunpack.c.h.bf16 %v34
    %v87 = vunpack.c.l.bf16 %v35
    %v88 = vunpack.c.h.bf16 %v35
    %v89 = vunpack.c.l.bf16 %v36
    %v90 = vunpack.c.h.bf16 %v36
    %v91 = vunpack.c.l.bf16 %v37
    %v92 = vunpack.c.h.bf16 %v37
    %v93 = vunpack.c.l.bf16 %v38
    %v94 = vunpack.c.h.bf16 %v38
    %v95 = vunpack.c.l.bf16 %v39
    %v96 = vunpack.c.h.bf16 %v39
    %v97 = vunpack.c.l.bf16 %v40
    %v98 = vunpack.c.h.bf16 %v40
    %v99 = vunpack.c.l.bf16 %v41
    %v100 = vunpack.c.h.bf16 %v41
    %v101 = vunpack.c.l.bf16 %v42
    %v102 = vunpack.c.h.bf16 %v42
    %v103 = vunpack.c.l.bf16 %v43
    %v104 = vunpack.c.h.bf16 %v43
    %v105 = vunpack.c.l.bf16 %v44
    %v106 = vunpack.c.h.bf16 %v44
    %v107 = vunpack.c.l.bf16 %v45
    %v108 = vunpack.c.h.bf16 %v45
    %v109 = vunpack.c.l.bf16 %v46
    %v110 = vunpack.c.h.bf16 %v46
    %v111 = vadd.f32 %v47, %v63
    %v112 = vrot.slane %v111, 4
    %v113 = vadd.f32 %v111, %v112
    %v114 = vrot.slane %v113, 2
    %v115 = vadd.f32 %v113, %v114
    %v116 = vrot.slane %v115, 1
    %v117 = vadd.f32 %v115, %v116
    %v118 = vadd.f32 %v48, %v64
    %v119 = vrot.slane %v118, 4
    %v120 = vadd.f32 %v118, %v119
    %v121 = vrot.slane %v120, 2
    %v122 = vadd.f32 %v120, %v121
    %v123 = vrot.slane %v122, 1
    %v124 = vadd.f32 %v122, %v123
    %v125 = vadd.f32 %v49, %v65
    %v126 = vrot.slane %v125, 4
    %v127 = vadd.f32 %v125, %v126
    %v128 = vrot.slane %v127, 2
    %v129 = vadd.f32 %v127, %v128
    %v130 = vrot.slane %v129, 1
    %v131 = vadd.f32 %v129, %v130
    %v132 = vadd.f32 %v50, %v66
    %v133 = vrot.slane %v132, 4
    %v134 = vadd.f32 %v132, %v133
    %v135 = vrot.slane %v134, 2
    %v136 = vadd.f32 %v134, %v135
    %v137 = vrot.slane %v136, 1
    %v138 = vadd.f32 %v136, %v137
    %v139 = vadd.f32 %v51, %v67
    %v140 = vrot.slane %v139, 4
    %v141 = vadd.f32 %v139, %v140
    %v142 = vrot.slane %v141, 2
    %v143 = vadd.f32 %v141, %v142
    %v144 = vrot.slane %v143, 1
    %v145 = vadd.f32 %v143, %v144
    %v146 = vadd.f32 %v52, %v68
    %v147 = vrot.slane %v146, 4
    %v148 = vadd.f32 %v146, %v147
    %v149 = vrot.slane %v148, 2
    %v150 = vadd.f32 %v148, %v149
    %v151 = vrot.slane %v150, 1
    %v152 = vadd.f32 %v150, %v151
    %v153 = vadd.f32 %v53, %v69
    %v154 = vrot.slane %v153, 4
    %v155 = vadd.f32 %v153, %v154
    %v156 = vrot.slane %v155, 2
    %v157 = vadd.f32 %v155, %v156
    %v158 = vrot.slane %v157, 1
    %v159 = vadd.f32 %v157, %v158
    %v160 = vadd.f32 %v54, %v70
    %v161 = vrot.slane %v160, 4
    %v162 = vadd.f32 %v160, %v161
    %v163 = vrot.slane %v162, 2
    %v164 = vadd.f32 %v162, %v163
    %v165 = vrot.slane %v164, 1
    %v166 = vadd.f32 %v164, %v165
    %v167 = vadd.f32 %v55, %v71
    %v168 = vrot.slane %v167, 4
    %v169 = vadd.f32 %v167, %v168
    %v170 = vrot.slane %v169, 2
    %v171 = vadd.f32 %v169, %v170
    %v172 = vrot.slane %v171, 1
    %v173 = vadd.f32 %v171, %v172
    %v174 = vadd.f32 %v56, %v72
    %v175 = vrot.slane %v174, 4
    %v176 = vadd.f32 %v174, %v175
    %v177 = vrot.slane %v176, 2
    %v178 = vadd.f32 %v176, %v177
    %v179 = vrot.slane %v178, 1
    %v180 = vadd.f32 %v178, %v179
    %v181 = vadd.f32 %v57, %v73
    %v182 = vrot.slane %v181, 4
    %v183 = vadd.f32 %v181, %v182
    %v184 = vrot.slane %v183, 2
    %v185 = vadd.f32 %v183, %v184
    %v186 = vrot.slane %v185, 1
    %v187 = vadd.f32 %v185, %v186
    %v188 = vadd.f32 %v58, %v74
    %v189 = vrot.slane %v188, 4
    %v190 = vadd.f32 %v188, %v189
    %v191 = vrot.slane %v190, 2
    %v192 = vadd.f32 %v190, %v191
    %v193 = vrot.slane %v192, 1
    %v194 = vadd.f32 %v192, %v193
    %v195 = vadd.f32 %v59, %v75
    %v196 = vrot.slane %v195, 4
    %v197 = vadd.f32 %v195, %v196
    %v198 = vrot.slane %v197, 2
    %v199 = vadd.f32 %v197, %v198
    %v200 = vrot.slane %v199, 1
    %v201 = vadd.f32 %v199, %v200
    %v202 = vadd.f32 %v60, %v76
    %v203 = vrot.slane %v202, 4
    %v204 = vadd.f32 %v202, %v203
    %v205 = vrot.slane %v204, 2
    %v206 = vadd.f32 %v204, %v205
    %v207 = vrot.slane %v206, 1
    %v208 = vadd.f32 %v206, %v207
    %v209 = vadd.f32 %v61, %v77
    %v210 = vrot.slane %v209, 4
    %v211 = vadd.f32 %v209, %v210
    %v212 = vrot.slane %v211, 2
    %v213 = vadd.f32 %v211, %v212
    %v214 = vrot.slane %v213, 1
    %v215 = vadd.f32 %v213, %v214
    %v216 = vadd.f32 %v62, %v78
    %v217 = vrot.slane %v216, 4
    %v218 = vadd.f32 %v216, %v217
    %v219 = vrot.slane %v218, 2
    %v220 = vadd.f32 %v218, %v219
    %v221 = vrot.slane %v220, 1
    %v222 = vadd.f32 %v220, %v221
    %v223 = vadd.f32 %v79, %v95
    %v224 = vrot.slane %v223, 4
    %v225 = vadd.f32 %v223, %v224
    %v226 = vrot.slane %v225, 2
    %v227 = vadd.f32 %v225, %v226
    %v228 = vrot.slane %v227, 1
    %v229 = vadd.f32 %v227, %v228
    %v230 = vadd.f32 %v80, %v96
    %v231 = vrot.slane %v230, 4
    %v232 = vadd.f32 %v230, %v231
    %v233 = vrot.slane %v232, 2
    %v234 = vadd.f32 %v232, %v233
    %v235 = vrot.slane %v234, 1
    %v236 = vadd.f32 %v234, %v235
    %v237 = vadd.f32 %v81, %v97
    %v238 = vrot.slane %v237, 4
    %v239 = vadd.f32 %v237, %v238
    %v240 = vrot.slane %v239, 2
    %v241 = vadd.f32 %v239, %v240
    %v242 = vrot.slane %v241, 1
    %v243 = vadd.f32 %v241, %v242
    %v244 = vadd.f32 %v82, %v98
    %v245 = vrot.slane %v244, 4
    %v246 = vadd.f32 %v244, %v245
    %v247 = vrot.slane %v246, 2
    %v248 = vadd.f32 %v246, %v247
    %v249 = vrot.slane %v248, 1
    %v250 = vadd.f32 %v248, %v249
    %v251 = vadd.f32 %v83, %v99
    %v252 = vrot.slane %v251, 4
    %v253 = vadd.f32 %v251, %v252
    %v254 = vrot.slane %v253, 2
    %v255 = vadd.f32 %v253, %v254
    %v256 = vrot.slane %v255, 1
    %v257 = vadd.f32 %v255, %v256
    %v258 = vadd.f32 %v84, %v100
    %v259 = vrot.slane %v258, 4
    %v260 = vadd.f32 %v258, %v259
    %v261 = vrot.slane %v260, 2
    %v262 = vadd.f32 %v260, %v261
    %v263 = vrot.slane %v262, 1
    %v264 = vadd.f32 %v262, %v263
    %v265 = vadd.f32 %v85, %v101
    %v266 = vrot.slane %v265, 4
    %v267 = vadd.f32 %v265, %v266
    %v268 = vrot.slane %v267, 2
    %v269 = vadd.f32 %v267, %v268
    %v270 = vrot.slane %v269, 1
    %v271 = vadd.f32 %v269, %v270
    %v272 = vadd.f32 %v86, %v102
    %v273 = vrot.slane %v272, 4
    %v274 = vadd.f32 %v272, %v273
    %v275 = vrot.slane %v274, 2
    %v276 = vadd.f32 %v274, %v275
    %v277 = vrot.slane %v276, 1
    %v278 = vadd.f32 %v276, %v277
    %v279 = vadd.f32 %v87, %v103
    %v280 = vrot.slane %v279, 4
    %v281 = vadd.f32 %v279, %v280
    %v282 = vrot.slane %v281, 2
    %v283 = vadd.f32 %v281, %v282
    %v284 = vrot.slane %v283, 1
    %v285 = vadd.f32 %v283, %v284
    %v286 = vadd.f32 %v88, %v104
    %v287 = vrot.slane %v286, 4
    %v288 = vadd.f32 %v286, %v287
    %v289 = vrot.slane %v288, 2
    %v290 = vadd.f32 %v288, %v289
    %v291 = vrot.slane %v290, 1
    %v292 = vadd.f32 %v290, %v291
    %v293 = vadd.f32 %v89, %v105
    %v294 = vrot.slane %v293, 4
    %v295 = vadd.f32 %v293, %v294
    %v296 = vrot.slane %v295, 2
    %v297 = vadd.f32 %v295, %v296
    %v298 = vrot.slane %v297, 1
    %v299 = vadd.f32 %v297, %v298
    %v300 = vadd.f32 %v90, %v106
    %v301 = vrot.slane %v300, 4
    %v302 = vadd.f32 %v300, %v301
    %v303 = vrot.slane %v302, 2
    %v304 = vadd.f32 %v302, %v303
    %v305 = vrot.slane %v304, 1
    %v306 = vadd.f32 %v304, %v305
    %v307 = vadd.f32 %v91, %v107
    %v308 = vrot.slane %v307, 4
    %v309 = vadd.f32 %v307, %v308
    %v310 = vrot.slane %v309, 2
    %v311 = vadd.f32 %v309, %v310
    %v312 = vrot.slane %v311, 1
    %v313 = vadd.f32 %v311, %v312
    %v314 = vadd.f32 %v92, %v108
    %v315 = vrot.slane %v314, 4
    %v316 = vadd.f32 %v314, %v315
    %v317 = vrot.slane %v316, 2
    %v318 = vadd.f32 %v316, %v317
    %v319 = vrot.slane %v318, 1
    %v320 = vadd.f32 %v318, %v319
    %v321 = vadd.f32 %v93, %v109
    %v322 = vrot.slane %v321, 4
    %v323 = vadd.f32 %v321, %v322
    %v324 = vrot.slane %v323, 2
    %v325 = vadd.f32 %v323, %v324
    %v326 = vrot.slane %v325, 1
    %v327 = vadd.f32 %v325, %v326
    %v328 = vadd.f32 %v94, %v110
    %v329 = vrot.slane %v328, 4
    %v330 = vadd.f32 %v328, %v329
    %v331 = vrot.slane %v330, 2
    %v332 = vadd.f32 %v330, %v331
    %v333 = vrot.slane %v332, 1
    %v334 = vadd.f32 %v332, %v333
    %v335 = vmul.f32 %v117, 0.0625
    %v336 = vmul.f32 %v124, 0.0625
    %v337 = vmul.f32 %v131, 0.0625
    %v338 = vmul.f32 %v138, 0.0625
    %v339 = vmul.f32 %v145, 0.0625
    %v340 = vmul.f32 %v152, 0.0625
    %v341 = vmul.f32 %v159, 0.0625
    %v342 = vmul.f32 %v166, 0.0625
    %v343 = vmul.f32 %v173, 0.0625
    %v344 = vmul.f32 %v180, 0.0625
    %v345 = vmul.f32 %v187, 0.0625
    %v346 = vmul.f32 %v194, 0.0625
    %v347 = vmul.f32 %v201, 0.0625
    %v348 = vmul.f32 %v208, 0.0625
    %v349 = vmul.f32 %v215, 0.0625
    %v350 = vmul.f32 %v222, 0.0625
    %v351 = vmul.f32 %v229, 0.0625
    %v352 = vmul.f32 %v236, 0.0625
    %v353 = vmul.f32 %v243, 0.0625
    %v354 = vmul.f32 %v250, 0.0625
    %v355 = vmul.f32 %v257, 0.0625
    %v356 = vmul.f32 %v264, 0.0625
    %v357 = vmul.f32 %v271, 0.0625
    %v358 = vmul.f32 %v278, 0.0625
    %v359 = vmul.f32 %v285, 0.0625
    %v360 = vmul.f32 %v292, 0.0625
    %v361 = vmul.f32 %v299, 0.0625
    %v362 = vmul.f32 %v306, 0.0625
    %v363 = vmul.f32 %v313, 0.0625
    %v364 = vmul.f32 %v320, 0.0625
    %v365 = vmul.f32 %v327, 0.0625
    %v366 = vmul.f32 %v334, 0.0625
    %v399 = vrot.slane %v336, 6
    %v400 = vrot.slane %v337, 4
    %v401 = vrot.slane %v338, 2
    %v402 = vrot.slane %v340, 6
    %v403 = vrot.slane %v341, 4
    %v404 = vrot.slane %v342, 2
    %v405 = vrot.slane %v344, 6
    %v406 = vrot.slane %v345, 4
    %v407 = vrot.slane %v346, 2
    %v408 = vrot.slane %v348, 6
    %v409 = vrot.slane %v349, 4
    %v410 = vrot.slane %v350, 2
    %v411 = vrot.slane %v352, 6
    %v412 = vrot.slane %v353, 4
    %v413 = vrot.slane %v354, 2
    %v414 = vrot.slane %v356, 6
    %v415 = vrot.slane %v357, 4
    %v416 = vrot.slane %v358, 2
    %v417 = vrot.slane %v360, 6
    %v418 = vrot.slane %v361, 4
    %v419 = vrot.slane %v362, 2
    %v420 = vrot.slane %v364, 6
    %v421 = vrot.slane %v365, 4
    %v422 = vrot.slane %v366, 2
    %vm423 = vcmask 1041408
    %v424 = vsel %vm423, %v335, %v399
    %vm425 = vcmask 1045508
    %v426 = vsel %vm425, %v400, %v401
    %vm427 = vcmask 1043456
    %v428 = vsel %vm427, %v424, %v426
    %v429 = vsel %vm423, %v339, %v402
    %v430 = vsel %vm425, %v403, %v404
    %v431 = vsel %vm427, %v429, %v430
    %v432 = vsel %vm423, %v343, %v405
    %v433 = vsel %vm425, %v406, %v407
    %v434 = vsel %vm427, %v432, %v433
    %v435 = vsel %vm423, %v347, %v408
    %v436 = vsel %vm425, %v409, %v410
    %v437 = vsel %vm427, %v435, %v436
    %v438 = vsel %vm423, %v351, %v411
    %v439 = vsel %vm425, %v412, %v413
    %v440 = vsel %vm427, %v438, %v439
    %v441 = vsel %vm423, %v355, %v414
    %v442 = vsel %vm425, %v415, %v416
    %v443 = vsel %vm427, %v441, %v442
    %v444 = vsel %vm423, %v359, %v417
    %v445 = vsel %vm425, %v418, %v419
    %v446 = vsel %vm427, %v444, %v445
    %v447 = vsel %vm423, %v363, %v420
    %v448 = vsel %vm425, %v421, %v422
    %v449 = vsel %vm427, %v447, %v448
    %vm450 = vcmask 1044484
    %v451 = vsel %vm450, %v428, %v428
    %vm452 = vcmask 1046534
    %v453 = vsel %vm452, %v428, %v451
    %v454 = vrot.slane %v440, 7
    %vm455 = vcmask 1041409
    %v456 = vsel %vm455, %v454, %v453
    %vm457 = vcmask 1043459
    %v458 = vsel %vm457, %v454, %v456
    %vm459 = vcmask 1045509
    %v460 = vsel %vm459, %v454, %v458
    %vm461 = vcmask 1047559
    %v462 = vsel %vm461, %v454, %v460
    %v463 = vsel %vm450, %v431, %v431
    %v464 = vsel %vm452, %v431, %v463
    %v465 = vrot.slane %v443, 7
    %v466 = vsel %vm455, %v465, %v464
    %v467 = vsel %vm457, %v465, %v466
    %v468 = vsel %vm459, %v465, %v467
    %v469 = vsel %vm461, %v465, %v468
    %v470 = vsel %vm450, %v434, %v434
    %v471 = vsel %vm452, %v434, %v470
    %v472 = vrot.slane %v446, 7
    %v473 = vsel %vm455, %v472, %v471
    %v474 = vsel %vm457, %v472, %v473
    %v475 = vsel %vm459, %v472, %v474
    %v476 = vsel %vm461, %v472, %v475
    %v477 = vsel %vm450, %v437, %v437
    %v478 = vsel %vm452, %v437, %v477
    %v479 = vrot.slane %v449, 7
    %v480 = vsel %vm455, %v479, %v478
    %v481 = vsel %vm457, %v479, %v480
    %v482 = vsel %vm459, %v479, %v481
    %v483 = vsel %vm461, %v479, %v482
    %488 = vst [vmem:[#allocation2] sm:$0xff] %v462
    %489 = vst [vmem:[#allocation2 + $0x8] sm:$0xff] %v469
    %490 = vst [vmem:[#allocation2 + $0x10] sm:$0xff] %v476
    %491 = vst [vmem:[#allocation2 + $0x18] sm:$0xff] %v483
    %v492 = vpack.c.bf16 %v335, %v335
    %v493 = vpack.c.bf16 %v336, %v336
    %v494 = vpack.c.bf16 %v337, %v337
    %v495 = vpack.c.bf16 %v338, %v338
    %v496 = vpack.c.bf16 %v339, %v339
    %v497 = vpack.c.bf16 %v340, %v340
    %v498 = vpack.c.bf16 %v341, %v341
    %v499 = vpack.c.bf16 %v342, %v342
    %v500 = vpack.c.bf16 %v343, %v343
    %v501 = vpack.c.bf16 %v344, %v344
    %v502 = vpack.c.bf16 %v345, %v345
    %v503 = vpack.c.bf16 %v346, %v346
    %v504 = vpack.c.bf16 %v347, %v347
    %v505 = vpack.c.bf16 %v348, %v348
    %v506 = vpack.c.bf16 %v349, %v349
    %v507 = vpack.c.bf16 %v350, %v350
    %v508 = vpack.c.bf16 %v351, %v351
    %v509 = vpack.c.bf16 %v352, %v352
    %v510 = vpack.c.bf16 %v353, %v353
    %v511 = vpack.c.bf16 %v354, %v354
    %v512 = vpack.c.bf16 %v355, %v355
    %v513 = vpack.c.bf16 %v356, %v356
    %v514 = vpack.c.bf16 %v357, %v357
    %v515 = vpack.c.bf16 %v358, %v358
    %v516 = vpack.c.bf16 %v359, %v359
    %v517 = vpack.c.bf16 %v360, %v360
    %v518 = vpack.c.bf16 %v361, %v361
    %v519 = vpack.c.bf16 %v362, %v362
    %v520 = vpack.c.bf16 %v363, %v363
    %v521 = vpack.c.bf16 %v364, %v364
    %v522 = vpack.c.bf16 %v365, %v365
    %v523 = vpack.c.bf16 %v366, %v366
    %v524 = vld [vmem:[%s1] sm:$0xf]
    %v525 = vld [vmem:[%s1 + $0x4] sm:$0xf]
    %v526 = vld [vmem:[%s1 + $0x8] sm:$0xf]
    %v527 = vld [vmem:[%s1 + $0xc] sm:$0xf]
    %v528 = vld [vmem:[%s1 + $0x10] sm:$0xf]
    %v529 = vld [vmem:[%s1 + $0x14] sm:$0xf]
    %v530 = vld [vmem:[%s1 + $0x18] sm:$0xf]
    %v531 = vld [vmem:[%s1 + $0x1c] sm:$0xf]
    %v532 = vld [vmem:[%s1 + $0x20] sm:$0xf]
    %v533 = vld [vmem:[%s1 + $0x24] sm:$0xf]
    %v534 = vld [vmem:[%s1 + $0x28] sm:$0xf]
    %v535 = vld [vmem:[%s1 + $0x2c] sm:$0xf]
    %v536 = vld [vmem:[%s1 + $0x30] sm:$0xf]
    %v537 = vld [vmem:[%s1 + $0x34] sm:$0xf]
    %v538 = vld [vmem:[%s1 + $0x38] sm:$0xf]
    %v539 = vld [vmem:[%s1 + $0x3c] sm:$0xf]
    %v540 = vld [vmem:[%s1 + $0x40] sm:$0xf]
    %v541 = vld [vmem:[%s1 + $0x44] sm:$0xf]
    %v542 = vld [vmem:[%s1 + $0x48] sm:$0xf]
    %v543 = vld [vmem:[%s1 + $0x4c] sm:$0xf]
    %v544 = vld [vmem:[%s1 + $0x50] sm:$0xf]
    %v545 = vld [vmem:[%s1 + $0x54] sm:$0xf]
    %v546 = vld [vmem:[%s1 + $0x58] sm:$0xf]
    %v547 = vld [vmem:[%s1 + $0x5c] sm:$0xf]
    %v548 = vld [vmem:[%s1 + $0x60] sm:$0xf]
    %v549 = vld [vmem:[%s1 + $0x64] sm:$0xf]
    %v550 = vld [vmem:[%s1 + $0x68] sm:$0xf]
    %v551 = vld [vmem:[%s1 + $0x6c] sm:$0xf]
    %v552 = vld [vmem:[%s1 + $0x70] sm:$0xf]
    %v553 = vld [vmem:[%s1 + $0x74] sm:$0xf]
    %v554 = vld [vmem:[%s1 + $0x78] sm:$0xf]
    %v555 = vld [vmem:[%s1 + $0x7c] sm:$0xf]
    %v556 = vld [vmem:[%s1 + $0x80] sm:$0xf]
    %v557 = vld [vmem:[%s1 + $0x84] sm:$0xf]
    %v558 = vld [vmem:[%s1 + $0x88] sm:$0xf]
    %v559 = vld [vmem:[%s1 + $0x8c] sm:$0xf]
    %v560 = vld [vmem:[%s1 + $0x90] sm:$0xf]
    %v561 = vld [vmem:[%s1 + $0x94] sm:$0xf]
    %v562 = vld [vmem:[%s1 + $0x98] sm:$0xf]
    %v563 = vld [vmem:[%s1 + $0x9c] sm:$0xf]
    %v564 = vld [vmem:[%s1 + $0xa0] sm:$0xf]
    %v565 = vld [vmem:[%s1 + $0xa4] sm:$0xf]
    %v566 = vld [vmem:[%s1 + $0xa8] sm:$0xf]
    %v567 = vld [vmem:[%s1 + $0xac] sm:$0xf]
    %v568 = vld [vmem:[%s1 + $0xb0] sm:$0xf]
    %v569 = vld [vmem:[%s1 + $0xb4] sm:$0xf]
    %v570 = vld [vmem:[%s1 + $0xb8] sm:$0xf]
    %v571 = vld [vmem:[%s1 + $0xbc] sm:$0xf]
    %v572 = vld [vmem:[%s1 + $0xc0] sm:$0xf]
    %v573 = vld [vmem:[%s1 + $0xc4] sm:$0xf]
    %v574 = vld [vmem:[%s1 + $0xc8] sm:$0xf]
    %v575 = vld [vmem:[%s1 + $0xcc] sm:$0xf]
    %v576 = vld [vmem:[%s1 + $0xd0] sm:$0xf]
    %v577 = vld [vmem:[%s1 + $0xd4] sm:$0xf]
    %v578 = vld [vmem:[%s1 + $0xd8] sm:$0xf]
    %v579 = vld [vmem:[%s1 + $0xdc] sm:$0xf]
    %v580 = vld [vmem:[%s1 + $0xe0] sm:$0xf]
    %v581 = vld [vmem:[%s1 + $0xe4] sm:$0xf]
    %v582 = vld [vmem:[%s1 + $0xe8] sm:$0xf]
    %v583 = vld [vmem:[%s1 + $0xec] sm:$0xf]
    %v584 = vld [vmem:[%s1 + $0xf0] sm:$0xf]
    %v585 = vld [vmem:[%s1 + $0xf4] sm:$0xf]
    %v586 = vld [vmem:[%s1 + $0xf8] sm:$0xf]
    %v587 = vld [vmem:[%s1 + $0xfc] sm:$0xf]
    %v588 = vld [vmem:[%s1 + $0x100] sm:$0xf]
    %v589 = vld [vmem:[%s1 + $0x104] sm:$0xf]
    %v590 = vld [vmem:[%s1 + $0x108] sm:$0xf]
    %v591 = vld [vmem:[%s1 + $0x10c] sm:$0xf]
    %v592 = vld [vmem:[%s1 + $0x110] sm:$0xf]
    %v593 = vld [vmem:[%s1 + $0x114] sm:$0xf]
    %v594 = vld [vmem:[%s1 + $0x118] sm:$0xf]
    %v595 = vld [vmem:[%s1 + $0x11c] sm:$0xf]
    %v596 = vld [vmem:[%s1 + $0x120] sm:$0xf]
    %v597 = vld [vmem:[%s1 + $0x124] sm:$0xf]
    %v598 = vld [vmem:[%s1 + $0x128] sm:$0xf]
    %v599 = vld [vmem:[%s1 + $0x12c] sm:$0xf]
    %v600 = vld [vmem:[%s1 + $0x130] sm:$0xf]
    %v601 = vld [vmem:[%s1 + $0x134] sm:$0xf]
    %v602 = vld [vmem:[%s1 + $0x138] sm:$0xf]
    %v603 = vld [vmem:[%s1 + $0x13c] sm:$0xf]
    %v604 = vld [vmem:[%s1 + $0x140] sm:$0xf]
    %v605 = vld [vmem:[%s1 + $0x144] sm:$0xf]
    %v606 = vld [vmem:[%s1 + $0x148] sm:$0xf]
    %v607 = vld [vmem:[%s1 + $0x14c] sm:$0xf]
    %v608 = vld [vmem:[%s1 + $0x150] sm:$0xf]
    %v609 = vld [vmem:[%s1 + $0x154] sm:$0xf]
    %v610 = vld [vmem:[%s1 + $0x158] sm:$0xf]
    %v611 = vld [vmem:[%s1 + $0x15c] sm:$0xf]
    %v612 = vld [vmem:[%s1 + $0x160] sm:$0xf]
    %v613 = vld [vmem:[%s1 + $0x164] sm:$0xf]
    %v614 = vld [vmem:[%s1 + $0x168] sm:$0xf]
    %v615 = vld [vmem:[%s1 + $0x16c] sm:$0xf]
    %v616 = vld [vmem:[%s1 + $0x170] sm:$0xf]
    %v617 = vld [vmem:[%s1 + $0x174] sm:$0xf]
    %v618 = vld [vmem:[%s1 + $0x178] sm:$0xf]
    %v619 = vld [vmem:[%s1 + $0x17c] sm:$0xf]
    %v620 = vld [vmem:[%s1 + $0x180] sm:$0xf]
    %v621 = vld [vmem:[%s1 + $0x184] sm:$0xf]
    %v622 = vld [vmem:[%s1 + $0x188] sm:$0xf]
    %v623 = vld [vmem:[%s1 + $0x18c] sm:$0xf]
    %v624 = vld [vmem:[%s1 + $0x190] sm:$0xf]
    %v625 = vld [vmem:[%s1 + $0x194] sm:$0xf]
    %v626 = vld [vmem:[%s1 + $0x198] sm:$0xf]
    %v627 = vld [vmem:[%s1 + $0x19c] sm:$0xf]
    %v628 = vld [vmem:[%s1 + $0x1a0] sm:$0xf]
    %v629 = vld [vmem:[%s1 + $0x1a4] sm:$0xf]
    %v630 = vld [vmem:[%s1 + $0x1a8] sm:$0xf]
    %v631 = vld [vmem:[%s1 + $0x1ac] sm:$0xf]
    %v632 = vld [vmem:[%s1 + $0x1b0] sm:$0xf]
    %v633 = vld [vmem:[%s1 + $0x1b4] sm:$0xf]
    %v634 = vld [vmem:[%s1 + $0x1b8] sm:$0xf]
    %v635 = vld [vmem:[%s1 + $0x1bc] sm:$0xf]
    %v636 = vld [vmem:[%s1 + $0x1c0] sm:$0xf]
    %v637 = vld [vmem:[%s1 + $0x1c4] sm:$0xf]
    %v638 = vld [vmem:[%s1 + $0x1c8] sm:$0xf]
    %v639 = vld [vmem:[%s1 + $0x1cc] sm:$0xf]
    %v640 = vld [vmem:[%s1 + $0x1d0] sm:$0xf]
    %v641 = vld [vmem:[%s1 + $0x1d4] sm:$0xf]
    %v642 = vld [vmem:[%s1 + $0x1d8] sm:$0xf]
    %v643 = vld [vmem:[%s1 + $0x1dc] sm:$0xf]
    %v644 = vld [vmem:[%s1 + $0x1e0] sm:$0xf]
    %v645 = vld [vmem:[%s1 + $0x1e4] sm:$0xf]
    %v646 = vld [vmem:[%s1 + $0x1e8] sm:$0xf]
    %v647 = vld [vmem:[%s1 + $0x1ec] sm:$0xf]
    %v648 = vld [vmem:[%s1 + $0x1f0] sm:$0xf]
    %v649 = vld [vmem:[%s1 + $0x1f4] sm:$0xf]
    %v650 = vld [vmem:[%s1 + $0x1f8] sm:$0xf]
    %v651 = vld [vmem:[%s1 + $0x1fc] sm:$0xf]
    %v652 = vld [vmem:[%s1 + $0x200] sm:$0xf]
    %v653 = vld [vmem:[%s1 + $0x204] sm:$0xf]
    %v654 = vld [vmem:[%s1 + $0x208] sm:$0xf]
    %v655 = vld [vmem:[%s1 + $0x20c] sm:$0xf]
    %v656 = vld [vmem:[%s1 + $0x210] sm:$0xf]
    %v657 = vld [vmem:[%s1 + $0x214] sm:$0xf]
    %v658 = vld [vmem:[%s1 + $0x218] sm:$0xf]
    %v659 = vld [vmem:[%s1 + $0x21c] sm:$0xf]
    %v660 = vld [vmem:[%s1 + $0x220] sm:$0xf]
    %v661 = vld [vmem:[%s1 + $0x224] sm:$0xf]
    %v662 = vld [vmem:[%s1 + $0x228] sm:$0xf]
    %v663 = vld [vmem:[%s1 + $0x22c] sm:$0xf]
    %v664 = vld [vmem:[%s1 + $0x230] sm:$0xf]
    %v665 = vld [vmem:[%s1 + $0x234] sm:$0xf]
    %v666 = vld [vmem:[%s1 + $0x238] sm:$0xf]
    %v667 = vld [vmem:[%s1 + $0x23c] sm:$0xf]
    %v668 = vld [vmem:[%s1 + $0x240] sm:$0xf]
    %v669 = vld [vmem:[%s1 + $0x244] sm:$0xf]
    %v670 = vld [vmem:[%s1 + $0x248] sm:$0xf]
    %v671 = vld [vmem:[%s1 + $0x24c] sm:$0xf]
    %v672 = vld [vmem:[%s1 + $0x250] sm:$0xf]
    %v673 = vld [vmem:[%s1 + $0x254] sm:$0xf]
    %v674 = vld [vmem:[%s1 + $0x258] sm:$0xf]
    %v675 = vld [vmem:[%s1 + $0x25c] sm:$0xf]
    %v676 = vld [vmem:[%s1 + $0x260] sm:$0xf]
    %v677 = vld [vmem:[%s1 + $0x264] sm:$0xf]
    %v678 = vld [vmem:[%s1 + $0x268] sm:$0xf]
    %v679 = vld [vmem:[%s1 + $0x26c] sm:$0xf]
    %v680 = vld [vmem:[%s1 + $0x270] sm:$0xf]
    %v681 = vld [vmem:[%s1 + $0x274] sm:$0xf]
    %v682 = vld [vmem:[%s1 + $0x278] sm:$0xf]
    %v683 = vld [vmem:[%s1 + $0x27c] sm:$0xf]
    %v684 = vld [vmem:[%s1 + $0x280] sm:$0xf]
    %v685 = vld [vmem:[%s1 + $0x284] sm:$0xf]
    %v686 = vld [vmem:[%s1 + $0x288] sm:$0xf]
    %v687 = vld [vmem:[%s1 + $0x28c] sm:$0xf]
    %v688 = vld [vmem:[%s1 + $0x290] sm:$0xf]
    %v689 = vld [vmem:[%s1 + $0x294] sm:$0xf]
    %v690 = vld [vmem:[%s1 + $0x298] sm:$0xf]
    %v691 = vld [vmem:[%s1 + $0x29c] sm:$0xf]
    %v692 = vld [vmem:[%s1 + $0x2a0] sm:$0xf]
    %v693 = vld [vmem:[%s1 + $0x2a4] sm:$0xf]
    %v694 = vld [vmem:[%s1 + $0x2a8] sm:$0xf]
    %v695 = vld [vmem:[%s1 + $0x2ac] sm:$0xf]
    %v696 = vld [vmem:[%s1 + $0x2b0] sm:$0xf]
    %v697 = vld [vmem:[%s1 + $0x2b4] sm:$0xf]
    %v698 = vld [vmem:[%s1 + $0x2b8] sm:$0xf]
    %v699 = vld [vmem:[%s1 + $0x2bc] sm:$0xf]
    %v700 = vld [vmem:[%s1 + $0x2c0] sm:$0xf]
    %v701 = vld [vmem:[%s1 + $0x2c4] sm:$0xf]
    %v702 = vld [vmem:[%s1 + $0x2c8] sm:$0xf]
    %v703 = vld [vmem:[%s1 + $0x2cc] sm:$0xf]
    %v704 = vld [vmem:[%s1 + $0x2d0] sm:$0xf]
    %v705 = vld [vmem:[%s1 + $0x2d4] sm:$0xf]
    %v706 = vld [vmem:[%s1 + $0x2d8] sm:$0xf]
    %v707 = vld [vmem:[%s1 + $0x2dc] sm:$0xf]
    %v708 = vld [vmem:[%s1 + $0x2e0] sm:$0xf]
    %v709 = vld [vmem:[%s1 + $0x2e4] sm:$0xf]
    %v710 = vld [vmem:[%s1 + $0x2e8] sm:$0xf]
    %v711 = vld [vmem:[%s1 + $0x2ec] sm:$0xf]
    %v712 = vld [vmem:[%s1 + $0x2f0] sm:$0xf]
    %v713 = vld [vmem:[%s1 + $0x2f4] sm:$0xf]
    %v714 = vld [vmem:[%s1 + $0x2f8] sm:$0xf]
    %v715 = vld [vmem:[%s1 + $0x2fc] sm:$0xf]
    %v716 = vld [vmem:[%s1 + $0x300] sm:$0xf]
    %v717 = vld [vmem:[%s1 + $0x304] sm:$0xf]
    %v718 = vld [vmem:[%s1 + $0x308] sm:$0xf]
    %v719 = vld [vmem:[%s1 + $0x30c] sm:$0xf]
    %v720 = vld [vmem:[%s1 + $0x310] sm:$0xf]
    %v721 = vld [vmem:[%s1 + $0x314] sm:$0xf]
    %v722 = vld [vmem:[%s1 + $0x318] sm:$0xf]
    %v723 = vld [vmem:[%s1 + $0x31c] sm:$0xf]
    %v724 = vld [vmem:[%s1 + $0x320] sm:$0xf]
    %v725 = vld [vmem:[%s1 + $0x324] sm:$0xf]
    %v726 = vld [vmem:[%s1 + $0x328] sm:$0xf]
    %v727 = vld [vmem:[%s1 + $0x32c] sm:$0xf]
    %v728 = vld [vmem:[%s1 + $0x330] sm:$0xf]
    %v729 = vld [vmem:[%s1 + $0x334] sm:$0xf]
    %v730 = vld [vmem:[%s1 + $0x338] sm:$0xf]
    %v731 = vld [vmem:[%s1 + $0x33c] sm:$0xf]
    %v732 = vld [vmem:[%s1 + $0x340] sm:$0xf]
    %v733 = vld [vmem:[%s1 + $0x344] sm:$0xf]
    %v734 = vld [vmem:[%s1 + $0x348] sm:$0xf]
    %v735 = vld [vmem:[%s1 + $0x34c] sm:$0xf]
    %v736 = vld [vmem:[%s1 + $0x350] sm:$0xf]
    %v737 = vld [vmem:[%s1 + $0x354] sm:$0xf]
    %v738 = vld [vmem:[%s1 + $0x358] sm:$0xf]
    %v739 = vld [vmem:[%s1 + $0x35c] sm:$0xf]
    %v740 = vld [vmem:[%s1 + $0x360] sm:$0xf]
    %v741 = vld [vmem:[%s1 + $0x364] sm:$0xf]
    %v742 = vld [vmem:[%s1 + $0x368] sm:$0xf]
    %v743 = vld [vmem:[%s1 + $0x36c] sm:$0xf]
    %v744 = vld [vmem:[%s1 + $0x370] sm:$0xf]
    %v745 = vld [vmem:[%s1 + $0x374] sm:$0xf]
    %v746 = vld [vmem:[%s1 + $0x378] sm:$0xf]
    %v747 = vld [vmem:[%s1 + $0x37c] sm:$0xf]
    %v748 = vld [vmem:[%s1 + $0x380] sm:$0xf]
    %v749 = vld [vmem:[%s1 + $0x384] sm:$0xf]
    %v750 = vld [vmem:[%s1 + $0x388] sm:$0xf]
    %v751 = vld [vmem:[%s1 + $0x38c] sm:$0xf]
    %v752 = vld [vmem:[%s1 + $0x390] sm:$0xf]
    %v753 = vld [vmem:[%s1 + $0x394] sm:$0xf]
    %v754 = vld [vmem:[%s1 + $0x398] sm:$0xf]
    %v755 = vld [vmem:[%s1 + $0x39c] sm:$0xf]
    %v756 = vld [vmem:[%s1 + $0x3a0] sm:$0xf]
    %v757 = vld [vmem:[%s1 + $0x3a4] sm:$0xf]
    %v758 = vld [vmem:[%s1 + $0x3a8] sm:$0xf]
    %v759 = vld [vmem:[%s1 + $0x3ac] sm:$0xf]
    %v760 = vld [vmem:[%s1 + $0x3b0] sm:$0xf]
    %v761 = vld [vmem:[%s1 + $0x3b4] sm:$0xf]
    %v762 = vld [vmem:[%s1 + $0x3b8] sm:$0xf]
    %v763 = vld [vmem:[%s1 + $0x3bc] sm:$0xf]
    %v764 = vld [vmem:[%s1 + $0x3c0] sm:$0xf]
    %v765 = vld [vmem:[%s1 + $0x3c4] sm:$0xf]
    %v766 = vld [vmem:[%s1 + $0x3c8] sm:$0xf]
    %v767 = vld [vmem:[%s1 + $0x3cc] sm:$0xf]
    %v768 = vld [vmem:[%s1 + $0x3d0] sm:$0xf]
    %v769 = vld [vmem:[%s1 + $0x3d4] sm:$0xf]
    %v770 = vld [vmem:[%s1 + $0x3d8] sm:$0xf]
    %v771 = vld [vmem:[%s1 + $0x3dc] sm:$0xf]
    %v772 = vld [vmem:[%s1 + $0x3e0] sm:$0xf]
    %v773 = vld [vmem:[%s1 + $0x3e4] sm:$0xf]
    %v774 = vld [vmem:[%s1 + $0x3e8] sm:$0xf]
    %v775 = vld [vmem:[%s1 + $0x3ec] sm:$0xf]
    %v776 = vld [vmem:[%s1 + $0x3f0] sm:$0xf]
    %v777 = vld [vmem:[%s1 + $0x3f4] sm:$0xf]
    %v778 = vld [vmem:[%s1 + $0x3f8] sm:$0xf]
    %v779 = vld [vmem:[%s1 + $0x3fc] sm:$0xf]
    %v812 = vunpack.c.l.b16 %v492
    %v813 = vunpack.c.l.b16 %v493
    %v814 = vunpack.c.l.b16 %v494
    %v815 = vunpack.c.l.b16 %v495
    %v816 = vunpack.c.l.b16 %v496
    %v817 = vunpack.c.l.b16 %v497
    %v818 = vunpack.c.l.b16 %v498
    %v819 = vunpack.c.l.b16 %v499
    %v820 = vunpack.c.l.b16 %v500
    %v821 = vunpack.c.l.b16 %v501
    %v822 = vunpack.c.l.b16 %v502
    %v823 = vunpack.c.l.b16 %v503
    %v824 = vunpack.c.l.b16 %v504
    %v825 = vunpack.c.l.b16 %v505
    %v826 = vunpack.c.l.b16 %v506
    %v827 = vunpack.c.l.b16 %v507
    %v828 = vunpack.c.l.b16 %v508
    %v829 = vunpack.c.l.b16 %v509
    %v830 = vunpack.c.l.b16 %v510
    %v831 = vunpack.c.l.b16 %v511
    %v832 = vunpack.c.l.b16 %v512
    %v833 = vunpack.c.l.b16 %v513
    %v834 = vunpack.c.l.b16 %v514
    %v835 = vunpack.c.l.b16 %v515
    %v836 = vunpack.c.l.b16 %v516
    %v837 = vunpack.c.l.b16 %v517
    %v838 = vunpack.c.l.b16 %v518
    %v839 = vunpack.c.l.b16 %v519
    %v840 = vunpack.c.l.b16 %v520
    %v841 = vunpack.c.l.b16 %v521
    %v842 = vunpack.c.l.b16 %v522
    %v843 = vunpack.c.l.b16 %v523
    %v844 = vsel %vm455, %v828, %v812
    %v845 = vsel %vm455, %v829, %v813
    %v846 = vsel %vm455, %v830, %v814
    %v847 = vsel %vm455, %v831, %v815
    %v848 = vsel %vm455, %v832, %v816
    %v849 = vsel %vm455, %v833, %v817
    %v850 = vsel %vm455, %v834, %v818
    %v851 = vsel %vm455, %v835, %v819
    %v852 = vsel %vm455, %v836, %v820
    %v853 = vsel %vm455, %v837, %v821
    %v854 = vsel %vm455, %v838, %v822
    %v855 = vsel %vm455, %v839, %v823
    %v856 = vsel %vm455, %v840, %v824
    %v857 = vsel %vm455, %v841, %v825
    %v858 = vsel %vm455, %v842, %v826
    %v859 = vsel %vm455, %v843, %v827
    %v860 = vpack.c.b16 %v844, %v844
    %v861 = vpack.c.b16 %v845, %v845
    %v862 = vpack.c.b16 %v846, %v846
    %v863 = vpack.c.b16 %v847, %v847
    %v864 = vpack.c.b16 %v848, %v848
    %v865 = vpack.c.b16 %v849, %v849
    %v866 = vpack.c.b16 %v850, %v850
    %v867 = vpack.c.b16 %v851, %v851
    %v868 = vpack.c.b16 %v852, %v852
    %v869 = vpack.c.b16 %v853, %v853
    %v870 = vpack.c.b16 %v854, %v854
    %v871 = vpack.c.b16 %v855, %v855
    %v872 = vpack.c.b16 %v856, %v856
    %v873 = vpack.c.b16 %v857, %v857
    %v874 = vpack.c.b16 %v858, %v858
    %v875 = vpack.c.b16 %v859, %v859
    %v1148 = vunpack.c.l.b16 %v524
    %v1149 = vunpack.c.l.b16 %v525
    %v1150 = vunpack.c.l.b16 %v526
    %v1151 = vunpack.c.l.b16 %v527
    %v1152 = vunpack.c.l.b16 %v528
    %v1153 = vunpack.c.l.b16 %v529
    %v1154 = vunpack.c.l.b16 %v530
    %v1155 = vunpack.c.l.b16 %v531
    %v1156 = vunpack.c.l.b16 %v532
    %v1157 = vunpack.c.l.b16 %v533
    %v1158 = vunpack.c.l.b16 %v534
    %v1159 = vunpack.c.l.b16 %v535
    %v1160 = vunpack.c.l.b16 %v536
    %v1161 = vunpack.c.l.b16 %v537
    %v1162 = vunpack.c.l.b16 %v538
    %v1163 = vunpack.c.l.b16 %v539
    %v1164 = vunpack.c.l.b16 %v540
    %v1165 = vunpack.c.l.b16 %v541
    %v1166 = vunpack.c.l.b16 %v542
    %v1167 = vunpack.c.l.b16 %v543
    %v1168 = vunpack.c.l.b16 %v544
    %v1169 = vunpack.c.l.b16 %v545
    %v1170 = vunpack.c.l.b16 %v546
    %v1171 = vunpack.c.l.b16 %v547
    %v1172 = vunpack.c.l.b16 %v548
    %v1173 = vunpack.c.l.b16 %v549
    %v1174 = vunpack.c.l.b16 %v550
    %v1175 = vunpack.c.l.b16 %v551
    %v1176 = vunpack.c.l.b16 %v552
    %v1177 = vunpack.c.l.b16 %v553
    %v1178 = vunpack.c.l.b16 %v554
    %v1179 = vunpack.c.l.b16 %v555
    %v1180 = vunpack.c.l.b16 %v556
    %v1181 = vunpack.c.l.b16 %v557
    %v1182 = vunpack.c.l.b16 %v558
    %v1183 = vunpack.c.l.b16 %v559
    %v1184 = vunpack.c.l.b16 %v560
    %v1185 = vunpack.c.l.b16 %v561
    %v1186 = vunpack.c.l.b16 %v562
    %v1187 = vunpack.c.l.b16 %v563
    %v1188 = vunpack.c.l.b16 %v564
    %v1189 = vunpack.c.l.b16 %v565
    %v1190 = vunpack.c.l.b16 %v566
    %v1191 = vunpack.c.l.b16 %v567
    %v1192 = vunpack.c.l.b16 %v568
    %v1193 = vunpack.c.l.b16 %v569
    %v1194 = vunpack.c.l.b16 %v570
    %v1195 = vunpack.c.l.b16 %v571
    %v1196 = vunpack.c.l.b16 %v572
    %v1197 = vunpack.c.l.b16 %v573
    %v1198 = vunpack.c.l.b16 %v574
    %v1199 = vunpack.c.l.b16 %v575
    %v1200 = vunpack.c.l.b16 %v576
    %v1201 = vunpack.c.l.b16 %v577
    %v1202 = vunpack.c.l.b16 %v578
    %v1203 = vunpack.c.l.b16 %v579
    %v1204 = vunpack.c.l.b16 %v580
    %v1205 = vunpack.c.l.b16 %v581
    %v1206 = vunpack.c.l.b16 %v582
    %v1207 = vunpack.c.l.b16 %v583
    %v1208 = vunpack.c.l.b16 %v584
    %v1209 = vunpack.c.l.b16 %v585
    %v1210 = vunpack.c.l.b16 %v586
    %v1211 = vunpack.c.l.b16 %v587
    %v1212 = vunpack.c.l.b16 %v588
    %v1213 = vunpack.c.l.b16 %v589
    %v1214 = vunpack.c.l.b16 %v590
    %v1215 = vunpack.c.l.b16 %v591
    %v1216 = vunpack.c.l.b16 %v592
    %v1217 = vunpack.c.l.b16 %v593
    %v1218 = vunpack.c.l.b16 %v594
    %v1219 = vunpack.c.l.b16 %v595
    %v1220 = vunpack.c.l.b16 %v596
    %v1221 = vunpack.c.l.b16 %v597
    %v1222 = vunpack.c.l.b16 %v598
    %v1223 = vunpack.c.l.b16 %v599
    %v1224 = vunpack.c.l.b16 %v600
    %v1225 = vunpack.c.l.b16 %v601
    %v1226 = vunpack.c.l.b16 %v602
    %v1227 = vunpack.c.l.b16 %v603
    %v1228 = vunpack.c.l.b16 %v604
    %v1229 = vunpack.c.l.b16 %v605
    %v1230 = vunpack.c.l.b16 %v606
    %v1231 = vunpack.c.l.b16 %v607
    %v1232 = vunpack.c.l.b16 %v608
    %v1233 = vunpack.c.l.b16 %v609
    %v1234 = vunpack.c.l.b16 %v610
    %v1235 = vunpack.c.l.b16 %v611
    %v1236 = vunpack.c.l.b16 %v612
    %v1237 = vunpack.c.l.b16 %v613
    %v1238 = vunpack.c.l.b16 %v614
    %v1239 = vunpack.c.l.b16 %v615
    %v1240 = vunpack.c.l.b16 %v616
    %v1241 = vunpack.c.l.b16 %v617
    %v1242 = vunpack.c.l.b16 %v618
    %v1243 = vunpack.c.l.b16 %v619
    %v1244 = vunpack.c.l.b16 %v620
    %v1245 = vunpack.c.l.b16 %v621
    %v1246 = vunpack.c.l.b16 %v622
    %v1247 = vunpack.c.l.b16 %v623
    %v1248 = vunpack.c.l.b16 %v624
    %v1249 = vunpack.c.l.b16 %v625
    %v1250 = vunpack.c.l.b16 %v626
    %v1251 = vunpack.c.l.b16 %v627
    %v1252 = vunpack.c.l.b16 %v628
    %v1253 = vunpack.c.l.b16 %v629
    %v1254 = vunpack.c.l.b16 %v630
    %v1255 = vunpack.c.l.b16 %v631
    %v1256 = vunpack.c.l.b16 %v632
    %v1257 = vunpack.c.l.b16 %v633
    %v1258 = vunpack.c.l.b16 %v634
    %v1259 = vunpack.c.l.b16 %v635
    %v1260 = vunpack.c.l.b16 %v636
    %v1261 = vunpack.c.l.b16 %v637
    %v1262 = vunpack.c.l.b16 %v638
    %v1263 = vunpack.c.l.b16 %v639
    %v1264 = vunpack.c.l.b16 %v640
    %v1265 = vunpack.c.l.b16 %v641
    %v1266 = vunpack.c.l.b16 %v642
    %v1267 = vunpack.c.l.b16 %v643
    %v1268 = vunpack.c.l.b16 %v644
    %v1269 = vunpack.c.l.b16 %v645
    %v1270 = vunpack.c.l.b16 %v646
    %v1271 = vunpack.c.l.b16 %v647
    %v1272 = vunpack.c.l.b16 %v648
    %v1273 = vunpack.c.l.b16 %v649
    %v1274 = vunpack.c.l.b16 %v650
    %v1275 = vunpack.c.l.b16 %v651
    %v1276 = vunpack.c.l.b16 %v652
    %v1277 = vunpack.c.l.b16 %v653
    %v1278 = vunpack.c.l.b16 %v654
    %v1279 = vunpack.c.l.b16 %v655
    %v1280 = vunpack.c.l.b16 %v656
    %v1281 = vunpack.c.l.b16 %v657
    %v1282 = vunpack.c.l.b16 %v658
    %v1283 = vunpack.c.l.b16 %v659
    %v1284 = vunpack.c.l.b16 %v660
    %v1285 = vunpack.c.l.b16 %v661
    %v1286 = vunpack.c.l.b16 %v662
    %v1287 = vunpack.c.l.b16 %v663
    %v1288 = vunpack.c.l.b16 %v664
    %v1289 = vunpack.c.l.b16 %v665
    %v1290 = vunpack.c.l.b16 %v666
    %v1291 = vunpack.c.l.b16 %v667
    %v1292 = vunpack.c.l.b16 %v668
    %v1293 = vunpack.c.l.b16 %v669
    %v1294 = vunpack.c.l.b16 %v670
    %v1295 = vunpack.c.l.b16 %v671
    %v1296 = vunpack.c.l.b16 %v672
    %v1297 = vunpack.c.l.b16 %v673
    %v1298 = vunpack.c.l.b16 %v674
    %v1299 = vunpack.c.l.b16 %v675
    %v1300 = vunpack.c.l.b16 %v676
    %v1301 = vunpack.c.l.b16 %v677
    %v1302 = vunpack.c.l.b16 %v678
    %v1303 = vunpack.c.l.b16 %v679
    %v1304 = vunpack.c.l.b16 %v680
    %v1305 = vunpack.c.l.b16 %v681
    %v1306 = vunpack.c.l.b16 %v682
    %v1307 = vunpack.c.l.b16 %v683
    %v1308 = vunpack.c.l.b16 %v684
    %v1309 = vunpack.c.l.b16 %v685
    %v1310 = vunpack.c.l.b16 %v686
    %v1311 = vunpack.c.l.b16 %v687
    %v1312 = vunpack.c.l.b16 %v688
    %v1313 = vunpack.c.l.b16 %v689
    %v1314 = vunpack.c.l.b16 %v690
    %v1315 = vunpack.c.l.b16 %v691
    %v1316 = vunpack.c.l.b16 %v692
    %v1317 = vunpack.c.l.b16 %v693
    %v1318 = vunpack.c.l.b16 %v694
    %v1319 = vunpack.c.l.b16 %v695
    %v1320 = vunpack.c.l.b16 %v696
    %v1321 = vunpack.c.l.b16 %v697
    %v1322 = vunpack.c.l.b16 %v698
    %v1323 = vunpack.c.l.b16 %v699
    %v1324 = vunpack.c.l.b16 %v700
    %v1325 = vunpack.c.l.b16 %v701
    %v1326 = vunpack.c.l.b16 %v702
    %v1327 = vunpack.c.l.b16 %v703
    %v1328 = vunpack.c.l.b16 %v704
    %v1329 = vunpack.c.l.b16 %v705
    %v1330 = vunpack.c.l.b16 %v706
    %v1331 = vunpack.c.l.b16 %v707
    %v1332 = vunpack.c.l.b16 %v708
    %v1333 = vunpack.c.l.b16 %v709
    %v1334 = vunpack.c.l.b16 %v710
    %v1335 = vunpack.c.l.b16 %v711
    %v1336 = vunpack.c.l.b16 %v712
    %v1337 = vunpack.c.l.b16 %v713
    %v1338 = vunpack.c.l.b16 %v714
    %v1339 = vunpack.c.l.b16 %v715
    %v1340 = vunpack.c.l.b16 %v716
    %v1341 = vunpack.c.l.b16 %v717
    %v1342 = vunpack.c.l.b16 %v718
    %v1343 = vunpack.c.l.b16 %v719
    %v1344 = vunpack.c.l.b16 %v720
    %v1345 = vunpack.c.l.b16 %v721
    %v1346 = vunpack.c.l.b16 %v722
    %v1347 = vunpack.c.l.b16 %v723
    %v1348 = vunpack.c.l.b16 %v724
    %v1349 = vunpack.c.l.b16 %v725
    %v1350 = vunpack.c.l.b16 %v726
    %v1351 = vunpack.c.l.b16 %v727
    %v1352 = vunpack.c.l.b16 %v728
    %v1353 = vunpack.c.l.b16 %v729
    %v1354 = vunpack.c.l.b16 %v730
    %v1355 = vunpack.c.l.b16 %v731
    %v1356 = vunpack.c.l.b16 %v732
    %v1357 = vunpack.c.l.b16 %v733
    %v1358 = vunpack.c.l.b16 %v734
    %v1359 = vunpack.c.l.b16 %v735
    %v1360 = vunpack.c.l.b16 %v736
    %v1361 = vunpack.c.l.b16 %v737
    %v1362 = vunpack.c.l.b16 %v738
    %v1363 = vunpack.c.l.b16 %v739
    %v1364 = vunpack.c.l.b16 %v740
    %v1365 = vunpack.c.l.b16 %v741
    %v1366 = vunpack.c.l.b16 %v742
    %v1367 = vunpack.c.l.b16 %v743
    %v1368 = vunpack.c.l.b16 %v744
    %v1369 = vunpack.c.l.b16 %v745
    %v1370 = vunpack.c.l.b16 %v746
    %v1371 = vunpack.c.l.b16 %v747
    %v1372 = vunpack.c.l.b16 %v748
    %v1373 = vunpack.c.l.b16 %v749
    %v1374 = vunpack.c.l.b16 %v750
    %v1375 = vunpack.c.l.b16 %v751
    %v1376 = vunpack.c.l.b16 %v752
    %v1377 = vunpack.c.l.b16 %v753
    %v1378 = vunpack.c.l.b16 %v754
    %v1379 = vunpack.c.l.b16 %v755
    %v1380 = vunpack.c.l.b16 %v756
    %v1381 = vunpack.c.l.b16 %v757
    %v1382 = vunpack.c.l.b16 %v758
    %v1383 = vunpack.c.l.b16 %v759
    %v1384 = vunpack.c.l.b16 %v760
    %v1385 = vunpack.c.l.b16 %v761
    %v1386 = vunpack.c.l.b16 %v762
    %v1387 = vunpack.c.l.b16 %v763
    %v1388 = vunpack.c.l.b16 %v764
    %v1389 = vunpack.c.l.b16 %v765
    %v1390 = vunpack.c.l.b16 %v766
    %v1391 = vunpack.c.l.b16 %v767
    %v1392 = vunpack.c.l.b16 %v768
    %v1393 = vunpack.c.l.b16 %v769
    %v1394 = vunpack.c.l.b16 %v770
    %v1395 = vunpack.c.l.b16 %v771
    %v1396 = vunpack.c.l.b16 %v772
    %v1397 = vunpack.c.l.b16 %v773
    %v1398 = vunpack.c.l.b16 %v774
    %v1399 = vunpack.c.l.b16 %v775
    %v1400 = vunpack.c.l.b16 %v776
    %v1401 = vunpack.c.l.b16 %v777
    %v1402 = vunpack.c.l.b16 %v778
    %v1403 = vunpack.c.l.b16 %v779
    %v1404 = vpack.c.b16 %v1149, %v1148
    %v1405 = vpack.c.b16 %v1151, %v1150
    %v1406 = vpack.c.b16 %v1153, %v1152
    %v1407 = vpack.c.b16 %v1155, %v1154
    %v1408 = vpack.c.b16 %v1157, %v1156
    %v1409 = vpack.c.b16 %v1159, %v1158
    %v1410 = vpack.c.b16 %v1161, %v1160
    %v1411 = vpack.c.b16 %v1163, %v1162
    %v1412 = vpack.c.b16 %v1165, %v1164
    %v1413 = vpack.c.b16 %v1167, %v1166
    %v1414 = vpack.c.b16 %v1169, %v1168
    %v1415 = vpack.c.b16 %v1171, %v1170
    %v1416 = vpack.c.b16 %v1173, %v1172
    %v1417 = vpack.c.b16 %v1175, %v1174
    %v1418 = vpack.c.b16 %v1177, %v1176
    %v1419 = vpack.c.b16 %v1179, %v1178
    %v1420 = vpack.c.b16 %v1181, %v1180
    %v1421 = vpack.c.b16 %v1183, %v1182
    %v1422 = vpack.c.b16 %v1185, %v1184
    %v1423 = vpack.c.b16 %v1187, %v1186
    %v1424 = vpack.c.b16 %v1189, %v1188
    %v1425 = vpack.c.b16 %v1191, %v1190
    %v1426 = vpack.c.b16 %v1193, %v1192
    %v1427 = vpack.c.b16 %v1195, %v1194
    %v1428 = vpack.c.b16 %v1197, %v1196
    %v1429 = vpack.c.b16 %v1199, %v1198
    %v1430 = vpack.c.b16 %v1201, %v1200
    %v1431 = vpack.c.b16 %v1203, %v1202
    %v1432 = vpack.c.b16 %v1205, %v1204
    %v1433 = vpack.c.b16 %v1207, %v1206
    %v1434 = vpack.c.b16 %v1209, %v1208
    %v1435 = vpack.c.b16 %v1211, %v1210
    %v1436 = vpack.c.b16 %v1213, %v1212
    %v1437 = vpack.c.b16 %v1215, %v1214
    %v1438 = vpack.c.b16 %v1217, %v1216
    %v1439 = vpack.c.b16 %v1219, %v1218
    %v1440 = vpack.c.b16 %v1221, %v1220
    %v1441 = vpack.c.b16 %v1223, %v1222
    %v1442 = vpack.c.b16 %v1225, %v1224
    %v1443 = vpack.c.b16 %v1227, %v1226
    %v1444 = vpack.c.b16 %v1229, %v1228
    %v1445 = vpack.c.b16 %v1231, %v1230
    %v1446 = vpack.c.b16 %v1233, %v1232
    %v1447 = vpack.c.b16 %v1235, %v1234
    %v1448 = vpack.c.b16 %v1237, %v1236
    %v1449 = vpack.c.b16 %v1239, %v1238
    %v1450 = vpack.c.b16 %v1241, %v1240
    %v1451 = vpack.c.b16 %v1243, %v1242
    %v1452 = vpack.c.b16 %v1245, %v1244
    %v1453 = vpack.c.b16 %v1247, %v1246
    %v1454 = vpack.c.b16 %v1249, %v1248
    %v1455 = vpack.c.b16 %v1251, %v1250
    %v1456 = vpack.c.b16 %v1253, %v1252
    %v1457 = vpack.c.b16 %v1255, %v1254
    %v1458 = vpack.c.b16 %v1257, %v1256
    %v1459 = vpack.c.b16 %v1259, %v1258
    %v1460 = vpack.c.b16 %v1261, %v1260
    %v1461 = vpack.c.b16 %v1263, %v1262
    %v1462 = vpack.c.b16 %v1265, %v1264
    %v1463 = vpack.c.b16 %v1267, %v1266
    %v1464 = vpack.c.b16 %v1269, %v1268
    %v1465 = vpack.c.b16 %v1271, %v1270
    %v1466 = vpack.c.b16 %v1273, %v1272
    %v1467 = vpack.c.b16 %v1275, %v1274
    %v1468 = vpack.c.b16 %v1277, %v1276
    %v1469 = vpack.c.b16 %v1279, %v1278
    %v1470 = vpack.c.b16 %v1281, %v1280
    %v1471 = vpack.c.b16 %v1283, %v1282
    %v1472 = vpack.c.b16 %v1285, %v1284
    %v1473 = vpack.c.b16 %v1287, %v1286
    %v1474 = vpack.c.b16 %v1289, %v1288
    %v1475 = vpack.c.b16 %v1291, %v1290
    %v1476 = vpack.c.b16 %v1293, %v1292
    %v1477 = vpack.c.b16 %v1295, %v1294
    %v1478 = vpack.c.b16 %v1297, %v1296
    %v1479 = vpack.c.b16 %v1299, %v1298
    %v1480 = vpack.c.b16 %v1301, %v1300
    %v1481 = vpack.c.b16 %v1303, %v1302
    %v1482 = vpack.c.b16 %v1305, %v1304
    %v1483 = vpack.c.b16 %v1307, %v1306
    %v1484 = vpack.c.b16 %v1309, %v1308
    %v1485 = vpack.c.b16 %v1311, %v1310
    %v1486 = vpack.c.b16 %v1313, %v1312
    %v1487 = vpack.c.b16 %v1315, %v1314
    %v1488 = vpack.c.b16 %v1317, %v1316
    %v1489 = vpack.c.b16 %v1319, %v1318
    %v1490 = vpack.c.b16 %v1321, %v1320
    %v1491 = vpack.c.b16 %v1323, %v1322
    %v1492 = vpack.c.b16 %v1325, %v1324
    %v1493 = vpack.c.b16 %v1327, %v1326
    %v1494 = vpack.c.b16 %v1329, %v1328
    %v1495 = vpack.c.b16 %v1331, %v1330
    %v1496 = vpack.c.b16 %v1333, %v1332
    %v1497 = vpack.c.b16 %v1335, %v1334
    %v1498 = vpack.c.b16 %v1337, %v1336
    %v1499 = vpack.c.b16 %v1339, %v1338
    %v1500 = vpack.c.b16 %v1341, %v1340
    %v1501 = vpack.c.b16 %v1343, %v1342
    %v1502 = vpack.c.b16 %v1345, %v1344
    %v1503 = vpack.c.b16 %v1347, %v1346
    %v1504 = vpack.c.b16 %v1349, %v1348
    %v1505 = vpack.c.b16 %v1351, %v1350
    %v1506 = vpack.c.b16 %v1353, %v1352
    %v1507 = vpack.c.b16 %v1355, %v1354
    %v1508 = vpack.c.b16 %v1357, %v1356
    %v1509 = vpack.c.b16 %v1359, %v1358
    %v1510 = vpack.c.b16 %v1361, %v1360
    %v1511 = vpack.c.b16 %v1363, %v1362
    %v1512 = vpack.c.b16 %v1365, %v1364
    %v1513 = vpack.c.b16 %v1367, %v1366
    %v1514 = vpack.c.b16 %v1369, %v1368
    %v1515 = vpack.c.b16 %v1371, %v1370
    %v1516 = vpack.c.b16 %v1373, %v1372
    %v1517 = vpack.c.b16 %v1375, %v1374
    %v1518 = vpack.c.b16 %v1377, %v1376
    %v1519 = vpack.c.b16 %v1379, %v1378
    %v1520 = vpack.c.b16 %v1381, %v1380
    %v1521 = vpack.c.b16 %v1383, %v1382
    %v1522 = vpack.c.b16 %v1385, %v1384
    %v1523 = vpack.c.b16 %v1387, %v1386
    %v1524 = vpack.c.b16 %v1389, %v1388
    %v1525 = vpack.c.b16 %v1391, %v1390
    %v1526 = vpack.c.b16 %v1393, %v1392
    %v1527 = vpack.c.b16 %v1395, %v1394
    %v1528 = vpack.c.b16 %v1397, %v1396
    %v1529 = vpack.c.b16 %v1399, %v1398
    %v1530 = vpack.c.b16 %v1401, %v1400
    %v1531 = vpack.c.b16 %v1403, %v1402
    %1660 = vmatpush.bf16.msra.mxu0 %v1411
    %1661 = vmatpush.bf16.msra.mxu0 %v1410
    %1662 = vmatpush.bf16.msra.mxu0 %v1409
    %1663 = vmatpush.bf16.msra.mxu0 %v1408
    %1664 = vmatpush.bf16.msra.mxu0 %v1407
    %1665 = vmatpush.bf16.msra.mxu0 %v1406
    %1666 = vmatpush.bf16.msra.mxu0 %v1405
    %1667 = vmatpush.bf16.msra.mxu0 %v1404
    %1668 = vmatmul.bf16.gmra.mxu0 %v860
    %v1669 = vpop.f32.mrf.mxu0
    %v1670 = vadd.f32 0.0, %v1669
    %v1671 = vpop.f32.mrf.mxu0
    %1672 = vdwg.mxu0
    %1673 = vmatpush.bf16.msra.mxu0 %v1419
    %1674 = vmatpush.bf16.msra.mxu0 %v1418
    %1675 = vmatpush.bf16.msra.mxu0 %v1417
    %1676 = vmatpush.bf16.msra.mxu0 %v1416
    %1677 = vmatpush.bf16.msra.mxu0 %v1415
    %1678 = vmatpush.bf16.msra.mxu0 %v1414
    %1679 = vmatpush.bf16.msra.mxu0 %v1413
    %1680 = vmatpush.bf16.msra.mxu0 %v1412
    %1681 = vmatmul.bf16.gmra.mxu0 %v861
    %v1682 = vpop.f32.mrf.mxu0
    %v1683 = vadd.f32 %v1670, %v1682
    %v1684 = vpop.f32.mrf.mxu0
    %1685 = vdwg.mxu0
    %1686 = vmatpush.bf16.msra.mxu0 %v1427
    %1687 = vmatpush.bf16.msra.mxu0 %v1426
    %1688 = vmatpush.bf16.msra.mxu0 %v1425
    %1689 = vmatpush.bf16.msra.mxu0 %v1424
    %1690 = vmatpush.bf16.msra.mxu0 %v1423
    %1691 = vmatpush.bf16.msra.mxu0 %v1422
    %1692 = vmatpush.bf16.msra.mxu0 %v1421
    %1693 = vmatpush.bf16.msra.mxu0 %v1420
    %1694 = vmatmul.bf16.gmra.mxu0 %v862
    %v1695 = vpop.f32.mrf.mxu0
    %v1696 = vadd.f32 %v1683, %v1695
    %v1697 = vpop.f32.mrf.mxu0
    %1698 = vdwg.mxu0
    %1699 = vmatpush.bf16.msra.mxu0 %v1435
    %1700 = vmatpush.bf16.msra.mxu0 %v1434
    %1701 = vmatpush.bf16.msra.mxu0 %v1433
    %1702 = vmatpush.bf16.msra.mxu0 %v1432
    %1703 = vmatpush.bf16.msra.mxu0 %v1431
    %1704 = vmatpush.bf16.msra.mxu0 %v1430
    %1705 = vmatpush.bf16.msra.mxu0 %v1429
    %1706 = vmatpush.bf16.msra.mxu0 %v1428
    %1707 = vmatmul.bf16.gmra.mxu0 %v863
    %v1708 = vpop.f32.mrf.mxu0
    %v1709 = vadd.f32 %v1696, %v1708
    %v1710 = vpop.f32.mrf.mxu0
    %1711 = vdwg.mxu0
    %1712 = vmatpush.bf16.msra.mxu0 %v1443
    %1713 = vmatpush.bf16.msra.mxu0 %v1442
    %1714 = vmatpush.bf16.msra.mxu0 %v1441
    %1715 = vmatpush.bf16.msra.mxu0 %v1440
    %1716 = vmatpush.bf16.msra.mxu0 %v1439
    %1717 = vmatpush.bf16.msra.mxu0 %v1438
    %1718 = vmatpush.bf16.msra.mxu0 %v1437
    %1719 = vmatpush.bf16.msra.mxu0 %v1436
    %1720 = vmatmul.bf16.gmra.mxu0 %v864
    %v1721 = vpop.f32.mrf.mxu0
    %v1722 = vadd.f32 %v1709, %v1721
    %v1723 = vpop.f32.mrf.mxu0
    %1724 = vdwg.mxu0
    %1725 = vmatpush.bf16.msra.mxu0 %v1451
    %1726 = vmatpush.bf16.msra.mxu0 %v1450
    %1727 = vmatpush.bf16.msra.mxu0 %v1449
    %1728 = vmatpush.bf16.msra.mxu0 %v1448
    %1729 = vmatpush.bf16.msra.mxu0 %v1447
    %1730 = vmatpush.bf16.msra.mxu0 %v1446
    %1731 = vmatpush.bf16.msra.mxu0 %v1445
    %1732 = vmatpush.bf16.msra.mxu0 %v1444
    %1733 = vmatmul.bf16.gmra.mxu0 %v865
    %v1734 = vpop.f32.mrf.mxu0
    %v1735 = vadd.f32 %v1722, %v1734
    %v1736 = vpop.f32.mrf.mxu0
    %1737 = vdwg.mxu0
    %1738 = vmatpush.bf16.msra.mxu0 %v1459
    %1739 = vmatpush.bf16.msra.mxu0 %v1458
    %1740 = vmatpush.bf16.msra.mxu0 %v1457
    %1741 = vmatpush.bf16.msra.mxu0 %v1456
    %1742 = vmatpush.bf16.msra.mxu0 %v1455
    %1743 = vmatpush.bf16.msra.mxu0 %v1454
    %1744 = vmatpush.bf16.msra.mxu0 %v1453
    %1745 = vmatpush.bf16.msra.mxu0 %v1452
    %1746 = vmatmul.bf16.gmra.mxu0 %v866
    %v1747 = vpop.f32.mrf.mxu0
    %v1748 = vadd.f32 %v1735, %v1747
    %v1749 = vpop.f32.mrf.mxu0
    %1750 = vdwg.mxu0
    %1751 = vmatpush.bf16.msra.mxu0 %v1467
    %1752 = vmatpush.bf16.msra.mxu0 %v1466
    %1753 = vmatpush.bf16.msra.mxu0 %v1465
    %1754 = vmatpush.bf16.msra.mxu0 %v1464
    %1755 = vmatpush.bf16.msra.mxu0 %v1463
    %1756 = vmatpush.bf16.msra.mxu0 %v1462
    %1757 = vmatpush.bf16.msra.mxu0 %v1461
    %1758 = vmatpush.bf16.msra.mxu0 %v1460
    %1759 = vmatmul.bf16.gmra.mxu0 %v867
    %v1760 = vpop.f32.mrf.mxu0
    %v1761 = vadd.f32 %v1748, %v1760
    %v1762 = vpop.f32.mrf.mxu0
    %1763 = vdwg.mxu0
    %1764 = vmatpush.bf16.msra.mxu0 %v1475
    %1765 = vmatpush.bf16.msra.mxu0 %v1474
    %1766 = vmatpush.bf16.msra.mxu0 %v1473
    %1767 = vmatpush.bf16.msra.mxu0 %v1472
    %1768 = vmatpush.bf16.msra.mxu0 %v1471
    %1769 = vmatpush.bf16.msra.mxu0 %v1470
    %1770 = vmatpush.bf16.msra.mxu0 %v1469
    %1771 = vmatpush.bf16.msra.mxu0 %v1468
    %1772 = vmatmul.bf16.gmra.mxu0 %v868
    %v1773 = vpop.f32.mrf.mxu0
    %v1774 = vadd.f32 %v1761, %v1773
    %v1775 = vpop.f32.mrf.mxu0
    %1776 = vdwg.mxu0
    %1777 = vmatpush.bf16.msra.mxu0 %v1483
    %1778 = vmatpush.bf16.msra.mxu0 %v1482
    %1779 = vmatpush.bf16.msra.mxu0 %v1481
    %1780 = vmatpush.bf16.msra.mxu0 %v1480
    %1781 = vmatpush.bf16.msra.mxu0 %v1479
    %1782 = vmatpush.bf16.msra.mxu0 %v1478
    %1783 = vmatpush.bf16.msra.mxu0 %v1477
    %1784 = vmatpush.bf16.msra.mxu0 %v1476
    %1785 = vmatmul.bf16.gmra.mxu0 %v869
    %v1786 = vpop.f32.mrf.mxu0
    %v1787 = vadd.f32 %v1774, %v1786
    %v1788 = vpop.f32.mrf.mxu0
    %1789 = vdwg.mxu0
    %1790 = vmatpush.bf16.msra.mxu0 %v1491
    %1791 = vmatpush.bf16.msra.mxu0 %v1490
    %1792 = vmatpush.bf16.msra.mxu0 %v1489
    %1793 = vmatpush.bf16.msra.mxu0 %v1488
    %1794 = vmatpush.bf16.msra.mxu0 %v1487
    %1795 = vmatpush.bf16.msra.mxu0 %v1486
    %1796 = vmatpush.bf16.msra.mxu0 %v1485
    %1797 = vmatpush.bf16.msra.mxu0 %v1484
    %1798 = vmatmul.bf16.gmra.mxu0 %v870
    %v1799 = vpop.f32.mrf.mxu0
    %v1800 = vadd.f32 %v1787, %v1799
    %v1801 = vpop.f32.mrf.mxu0
    %1802 = vdwg.mxu0
    %1803 = vmatpush.bf16.msra.mxu0 %v1499
    %1804 = vmatpush.bf16.msra.mxu0 %v1498
    %1805 = vmatpush.bf16.msra.mxu0 %v1497
    %1806 = vmatpush.bf16.msra.mxu0 %v1496
    %1807 = vmatpush.bf16.msra.mxu0 %v1495
    %1808 = vmatpush.bf16.msra.mxu0 %v1494
    %1809 = vmatpush.bf16.msra.mxu0 %v1493
    %1810 = vmatpush.bf16.msra.mxu0 %v1492
    %1811 = vmatmul.bf16.gmra.mxu0 %v871
    %v1812 = vpop.f32.mrf.mxu0
    %v1813 = vadd.f32 %v1800, %v1812
    %v1814 = vpop.f32.mrf.mxu0
    %1815 = vdwg.mxu0
    %1816 = vmatpush.bf16.msra.mxu0 %v1507
    %1817 = vmatpush.bf16.msra.mxu0 %v1506
    %1818 = vmatpush.bf16.msra.mxu0 %v1505
    %1819 = vmatpush.bf16.msra.mxu0 %v1504
    %1820 = vmatpush.bf16.msra.mxu0 %v1503
    %1821 = vmatpush.bf16.msra.mxu0 %v1502
    %1822 = vmatpush.bf16.msra.mxu0 %v1501
    %1823 = vmatpush.bf16.msra.mxu0 %v1500
    %1824 = vmatmul.bf16.gmra.mxu0 %v872
    %v1825 = vpop.f32.mrf.mxu0
    %v1826 = vadd.f32 %v1813, %v1825
    %v1827 = vpop.f32.mrf.mxu0
    %1828 = vdwg.mxu0
    %1829 = vmatpush.bf16.msra.mxu0 %v1515
    %1830 = vmatpush.bf16.msra.mxu0 %v1514
    %1831 = vmatpush.bf16.msra.mxu0 %v1513
    %1832 = vmatpush.bf16.msra.mxu0 %v1512
    %1833 = vmatpush.bf16.msra.mxu0 %v1511
    %1834 = vmatpush.bf16.msra.mxu0 %v1510
    %1835 = vmatpush.bf16.msra.mxu0 %v1509
    %1836 = vmatpush.bf16.msra.mxu0 %v1508
    %1837 = vmatmul.bf16.gmra.mxu0 %v873
    %v1838 = vpop.f32.mrf.mxu0
    %v1839 = vadd.f32 %v1826, %v1838
    %v1840 = vpop.f32.mrf.mxu0
    %1841 = vdwg.mxu0
    %1842 = vmatpush.bf16.msra.mxu0 %v1523
    %1843 = vmatpush.bf16.msra.mxu0 %v1522
    %1844 = vmatpush.bf16.msra.mxu0 %v1521
    %1845 = vmatpush.bf16.msra.mxu0 %v1520
    %1846 = vmatpush.bf16.msra.mxu0 %v1519
    %1847 = vmatpush.bf16.msra.mxu0 %v1518
    %1848 = vmatpush.bf16.msra.mxu0 %v1517
    %1849 = vmatpush.bf16.msra.mxu0 %v1516
    %1850 = vmatmul.bf16.gmra.mxu0 %v874
    %v1851 = vpop.f32.mrf.mxu0
    %v1852 = vadd.f32 %v1839, %v1851
    %v1853 = vpop.f32.mrf.mxu0
    %1854 = vdwg.mxu0
    %1855 = vmatpush.bf16.msra.mxu0 %v1531
    %1856 = vmatpush.bf16.msra.mxu0 %v1530
    %1857 = vmatpush.bf16.msra.mxu0 %v1529
    %1858 = vmatpush.bf16.msra.mxu0 %v1528
    %1859 = vmatpush.bf16.msra.mxu0 %v1527
    %1860 = vmatpush.bf16.msra.mxu0 %v1526
    %1861 = vmatpush.bf16.msra.mxu0 %v1525
    %1862 = vmatpush.bf16.msra.mxu0 %v1524
    %1863 = vmatmul.bf16.gmra.mxu0 %v875
    %v1864 = vpop.f32.mrf.mxu0
    %v1865 = vadd.f32 %v1852, %v1864
    %v1866 = vpop.f32.mrf.mxu0
    %1867 = vdwg.mxu0
    %1868 = vst [vmem:[#allocation4] sm:$0x3] %v1865
    // Predicated region
    $region10: #{_lambda_.1} parent=1 // pred_check
      _
    $region11: #{_lambda_.1} parent=1 // pred_check_branch
      %1870 = sbr.rel (0) target = $region13
    $region12: #{_lambda_.1} parent=1 // pred_region
      %1872 = vsyncadd [#allocation3], 0
      %s1874 = sshll.u32 [#allocation2], 4
      %s1875 = int_to_ptr.vmem [resolvable:$true] %s1874
      %s1876 = sshll.u32 %s2, 4
      %s1877 = int_to_ptr.hbm [resolvable:$true] %s1876
      %1879 = dma.vmem_to_hbm [thread:$0]  %s1875, 512, %s1877, [#allocation3]
    $region13: #{_lambda_.1} parent=1 // pred_fallthru
      _
    // Predicated region
    $region14: #{_lambda_.1} parent=1 // pred_check
      _
    $region15: #{_lambda_.1} parent=1 // pred_check_branch
      %1881 = sbr.rel (0) target = $region17
    $region16: #{_lambda_.1} parent=1 // pred_region
      %1883 = vsyncadd [#allocation5], 0
      %s1885 = sshll.u32 [#allocation4], 4
      %s1886 = int_to_ptr.vmem [resolvable:$true] %s1885
      %s1887 = sshll.u32 %s3, 4
      %s1888 = int_to_ptr.hbm [resolvable:$true] %s1887
      %1890 = dma.vmem_to_hbm [thread:$0]  %s1886, 32, %s1888, [#allocation5]
    $region17: #{_lambda_.1} parent=1 // pred_fallthru
      _
    // Predicated region
    $region18: #{_lambda_.1} parent=1 // pred_check
      _
    $region19: #{_lambda_.1} parent=1 // pred_check_branch
      %1892 = sbr.rel (0) target = $region21
    $region20: #{_lambda_.1} parent=1 // pred_region
      %1894 = dma.done [#allocation3], 512
    $region21: #{_lambda_.1} parent=1 // pred_fallthru
      _
    // Predicated region
    $region22: #{_lambda_.1} parent=1 // pred_check
      _
    $region23: #{_lambda_.1} parent=1 // pred_check_branch
      %1896 = sbr.rel (0) target = $region25
    $region24: #{_lambda_.1} parent=1 // pred_region
      %1898 = dma.done [#allocation5], 32
    $region25: #{_lambda_.1} parent=1 // pred_fallthru
      _
    %1899 = vsyncpa [#allocation3], 1
    %1900 = vsyncpa [#allocation5], 1

</llo_original>
